<compile_context>
chip_gen: v5e
topology: v5e:2x2
jax: 0.10.0
libtpu: 0.0.40
codegen_flags: <defaults>
</compile_context>

<pallas_src>
import functools

import jax
import jax.numpy as jnp
from jax import lax
from jax.experimental import pallas as pl
from jax.experimental.pallas import tpu as pltpu


# ---------------------------------------------------------------------------
# helpers
# ---------------------------------------------------------------------------
def _round_up(v, m):
    return (v + m - 1) // m * m


def _pick_len_tile(length, max_tl=512):
    """Largest multiple-of-8 divisor of `length` that is <= max_tl."""
    best = None
    for tl in range(8, min(length, max_tl) + 1, 8):
        if length % tl == 0:
            best = tl
    if best is None:
        raise ValueError("sequence length must be a multiple of 8")
    return best


def _shift_rows(a, k, out_len):
    """rows [k : k + out_len] of `a` without a sublane-misaligned slice.

    Uses an XLU sublane rotation (pltpu.roll); the only slice is an aligned
    prefix slice.  Wrapped-around rows land at indices >= a.shape[0] - k
    >= out_len, so they are discarded by the prefix slice.
    """
    if k == 0:
        return a[:out_len]
    return pltpu.roll(a, a.shape[0] - k, 0)[:out_len]


# ---------------------------------------------------------------------------
# fused Pallas kernel: conv1+bn1+relu -> conv2+bn2 (+x) + relu, one L-tile
# ---------------------------------------------------------------------------
def _basic_block_kernel(halo_ref, x_ref, w1_ref, b1_ref, w2_ref, b2_ref,
                        out_ref, *, K, L_total):
    """One (batch, length-tile) step.

    halo_ref: (1, 1, 2*(K-1), Cp)  left/right x halo rows (zeros past ends)
    x_ref:    (1, TL, Cp)          x tile (also the residual)
    w*_ref:   (K*Cp, Cp)           im2col conv weights, BN scale pre-folded
    b*_ref:   (1, Cp)              folded BN bias (f32)
    out_ref:  (1, TL, Cp)
    """
    TL = x_ref.shape[1]
    H = K - 1          # x halo per side needed by the two fused convs
    half = K // 2      # conv padding (4 for K=9)
    Ly = TL + H        # y is computed for the tile plus `half` per side

    halo = halo_ref[0, 0]                                   # (2H, Cp)
    core = x_ref[0]                                         # (TL, Cp)
    # window row m <-> x position t*TL - H + m   (zeros outside [0, L_total))
    xwin = jnp.concatenate([halo[:H], core, halo[H:]], axis=0)   # (TL+2H, Cp)

    # ---- conv1 + bn1 + relu (single matmul, contraction K*Cp) -------------
    col1 = jnp.concatenate([_shift_rows(xwin, k, Ly) for k in range(K)],
                           axis=1)                           # (Ly, K*Cp)
    acc1 = jnp.dot(col1, w1_ref[...], preferred_element_type=jnp.float32)
    y = jnp.maximum(acc1 + b1_ref[...], 0.0)                 # (Ly, Cp) f32

    # y rows outside the real sequence act as conv2's zero padding.
    t = pl.program_id(1)
    pos = t * TL - half + lax.broadcasted_iota(jnp.int32, (Ly, 1), 0)
    y = jnp.where((pos >= 0) & (pos < L_total), y, 0.0).astype(xwin.dtype)

    # ---- conv2 + bn2 + residual + relu -------------------------------------
    col2 = jnp.concatenate([_shift_rows(y, k, TL) for k in range(K)],
                           axis=1)                           # (TL, K*Cp)
    acc2 = jnp.dot(col2, w2_ref[...], preferred_element_type=jnp.float32)
    z = acc2 + b2_ref[...] + core.astype(jnp.float32)
    out_ref[0] = jnp.maximum(z, 0.0).astype(out_ref.dtype)


# ---------------------------------------------------------------------------
# wrapper: channel padding, L tiling + halo construction, BlockSpecs, grid
# ---------------------------------------------------------------------------
def basic_block_forward(x, params, *, max_len_tile=512):
    """BasicBlock(in_f == out_f, stride=1):
       y = relu(bn1(conv1(x)));  z = relu(bn2(conv2(y)) + x)."""
    N, L, C = x.shape
    K = params["w1"].shape[0]
    H = K - 1
    assert params["w1"].shape == (K, C, C), "stride=1 block expects in_f == out_f"

    Cp = _round_up(C, 128)                 # lane-dense channel dim
    TL = _pick_len_tile(L, max_len_tile)   # length tile (multiple of 8)
    nt = L // TL
    assert TL >= H

    def pad_c(a, axis, value=0.0):
        if Cp == C:
            return a
        widths = [(0, 0)] * a.ndim
        widths[axis] = (0, Cp - C)
        return jnp.pad(a, widths, constant_values=value)

    # NOTE: for a bf16 model, cast x / w to bf16 here (keep f32 accumulation);
    # the kernel is dtype-agnostic.  The demo stays f32 for a tight ref check.
    x_p = pad_c(x, 2)                                              # (N, L, Cp)

    # Fold BN scale into conv out-channels; keep bias separate (f32).
    w1 = params["w1"] * params["scale1"][None, None, :]
    w2 = params["w2"] * params["scale2"][None, None, :]
    w1 = pad_c(pad_c(w1, 1), 2)                                    # (K, Cp, Cp)
    w2 = pad_c(pad_c(w2, 1), 2)
    b1 = pad_c(params["bias1"].reshape(1, C), 1, 0.0).astype(jnp.float32)
    b2 = pad_c(params["bias2"].reshape(1, C), 1, 0.0).astype(jnp.float32)

    # im2col weight layout: row k*Cp + c  <->  (tap k, in-channel c)
    w1_rs = w1.reshape(K * Cp, Cp).astype(x.dtype)
    w2_rs = w2.reshape(K * Cp, Cp).astype(x.dtype)

    # Per-tile halos: K-1 rows of x on each side, zeros past the sequence
    # ends.  Only this small tensor is materialized (no full-length padded
    # copy of x in HBM).
    xr = x_p.reshape(N, nt, TL, Cp)
    zeros = jnp.zeros((N, 1, H, Cp), x_p.dtype)
    left = jnp.concatenate([zeros, xr[:, :-1, TL - H:, :]], axis=1)   # (N,nt,H,Cp)
    right = jnp.concatenate([xr[:, 1:, :H, :], zeros], axis=1)        # (N,nt,H,Cp)
    halos = jnp.concatenate([left, right], axis=2)                    # (N,nt,2H,Cp)

    kernel = functools.partial(_basic_block_kernel, K=K, L_total=L)

    out = pl.pallas_call(
        kernel,
        out_shape=jax.ShapeDtypeStruct((N, L, Cp), x.dtype),
        grid_spec=pltpu.PrefetchScalarGridSpec(
            num_scalar_prefetch=0,
            grid=(N, nt),
            in_specs=[
                pl.BlockSpec((1, 1, 2 * H, Cp), lambda n, t: (n, t, 0, 0)),  # halos
                pl.BlockSpec((1, TL, Cp), lambda n, t: (n, t, 0)),           # x tile
                pl.BlockSpec((K * Cp, Cp), lambda n, t: (0, 0)),             # w1 (scaled)
                pl.BlockSpec((1, Cp), lambda n, t: (0, 0)),                  # bn1 bias
                pl.BlockSpec((K * Cp, Cp), lambda n, t: (0, 0)),             # w2 (scaled)
                pl.BlockSpec((1, Cp), lambda n, t: (0, 0)),                  # bn2 bias
            ],
            out_specs=pl.BlockSpec((1, TL, Cp), lambda n, t: (n, t, 0)),
        ),
        compiler_params=pltpu.CompilerParams(
            dimension_semantics=("parallel", "parallel"),
            vmem_limit_bytes=48 * 1024 * 1024,
        ),
    )(halos, x_p, w1_rs, b1, w2_rs, b2)

    return out[..., :C] if Cp != C else out


# ---------------------------------------------------------------------------
# Deterministic parameter init (synthetic; mirrors the module's shapes)
# ---------------------------------------------------------------------------
def init_params(key, c, ksize=9):
    ks = jax.random.split(key, 6)

    def conv_w(k, cin, cout, ksz):
        # PyTorch Conv1d weight (cout, cin, ksz) -> our (ksz, cin, cout)
        w = jax.random.normal(k, (cout, cin, ksz), jnp.float32) * (2.0 / (cin * ksz)) ** 0.5
        return jnp.transpose(w, (2, 1, 0))

    def folded_bn(kg, kb, ch):
        gamma = 1.0 + 0.1 * jax.random.normal(kg, (ch,), jnp.float32)
        beta = 0.1 * jax.random.normal(kb, (ch,), jnp.float32)
        running_mean = jnp.zeros((ch,), jnp.float32)
        running_var = jnp.ones((ch,), jnp.float32)
        eps = 1e-5
        scale = gamma / jnp.sqrt(running_var + eps)
        bias = beta - running_mean * scale
        return scale, bias

    w1 = conv_w(ks[0], c, c, ksize)
    s1, b1 = folded_bn(ks[1], ks[2], c)
    w2 = conv_w(ks[3], c, c, ksize)
    s2, b2 = folded_bn(ks[4], ks[5], c)
    return dict(w1=w1, scale1=s1, bias1=b1, w2=w2, scale2=s2, bias2=b2)


# ---------------------------------------------------------------------------
# Pure-JAX reference (for correctness check only)
# ---------------------------------------------------------------------------
def _ref_conv1d(x_nlc, w_kio, padding):
    x_ncl = jnp.transpose(x_nlc, (0, 2, 1))
    w_oik = jnp.transpose(w_kio, (2, 1, 0))
    y = jax.lax.conv_general_dilated(
        x_ncl, w_oik, window_strides=(1,), padding=[(padding, padding)],
        dimension_numbers=("NCH", "OIH", "NCH"))
    return jnp.transpose(y, (0, 2, 1))


def _ref_forward(x, p):
    y = jnp.maximum(_ref_conv1d(x, p["w1"], 4) * p["scale1"] + p["bias1"], 0.0)
    z = _ref_conv1d(y, p["w2"], 4) * p["scale2"] + p["bias2"] + x
    return jnp.maximum(z, 0.0)


if __name__ == "__main__":
    key = jax.random.PRNGKey(0)
    kx, kp = jax.random.split(key)
    N, C, L = 2, 8, 16                      # batch, channels (in_f == out_f), length
    x = jax.random.normal(kx, (N, L, C), jnp.float32)
    params = init_params(kp, C)

    z = jax.jit(basic_block_forward)(x, params)
    z = jax.block_until_ready(z)

    z_ref = _ref_forward(x, params)
    assert z.shape == (N, L, C)
    assert jnp.allclose(z, z_ref, atol=5e-4, rtol=5e-4), "mismatch vs JAX reference"
    print("KERNEL_OK")
</pallas_src>

<mosaic_0001>
module attributes {stable_mosaic.version = 11 : i64} {
  func.func @_basic_block_kernel(%arg0: i32, %arg1: i32, %arg2: memref<1x1x16x128xf32, #tpu.memory_space<vmem>>, %arg3: memref<1x16x128xf32, #tpu.memory_space<vmem>>, %arg4: memref<1152x128xf32, #tpu.memory_space<vmem>>, %arg5: memref<1x128xf32, #tpu.memory_space<vmem>>, %arg6: memref<1152x128xf32, #tpu.memory_space<vmem>>, %arg7: memref<1x128xf32, #tpu.memory_space<vmem>>, %arg8: memref<1x16x128xf32, #tpu.memory_space<vmem>>) attributes {dimension_semantics = [#tpu.dimension_semantics<parallel>, #tpu.dimension_semantics<parallel>], iteration_bounds = array<i64: 2, 1>, scalar_prefetch = 0 : i64, scratch_operands = 0 : i64, tpu.core_type = #tpu.core_type<tc>, window_params = [{transform_indices = @transform_0, window_bounds = array<i64: 1, 1, 16, 128>}, {transform_indices = @transform_1, window_bounds = array<i64: 1, 16, 128>}, {pipeline_mode = #tpu.pipeline_mode<synchronous>, transform_indices = @transform_2, window_bounds = array<i64: 1152, 128>}, {pipeline_mode = #tpu.pipeline_mode<synchronous>, transform_indices = @transform_3, window_bounds = array<i64: 1, 128>}, {pipeline_mode = #tpu.pipeline_mode<synchronous>, transform_indices = @transform_4, window_bounds = array<i64: 1152, 128>}, {pipeline_mode = #tpu.pipeline_mode<synchronous>, transform_indices = @transform_5, window_bounds = array<i64: 1, 128>}, {transform_indices = @transform_6, window_bounds = array<i64: 1, 16, 128>}]} {
    %c0 = arith.constant 0 : index
    %c0_0 = arith.constant 0 : index
    %c0_1 = arith.constant 0 : index
    %c0_2 = arith.constant 0 : index
    %0 = vector.load %arg2[%c0, %c0_0, %c0_1, %c0_2] : memref<1x1x16x128xf32, #tpu.memory_space<vmem>>, vector<1x1x16x128xf32>
    %1 = vector.shape_cast %0 : vector<1x1x16x128xf32> to vector<16x128xf32>
    %c0_3 = arith.constant 0 : index
    %c0_4 = arith.constant 0 : index
    %c0_5 = arith.constant 0 : index
    %2 = vector.load %arg3[%c0_3, %c0_4, %c0_5] : memref<1x16x128xf32, #tpu.memory_space<vmem>>, vector<1x16x128xf32>
    %3 = vector.shape_cast %2 : vector<1x16x128xf32> to vector<16x128xf32>
    %4 = vector.extract_strided_slice %1 {offsets = [0, 0], sizes = [8, 128], strides = [1, 1]} : vector<16x128xf32> to vector<8x128xf32>
    %5 = vector.extract_strided_slice %1 {offsets = [8, 0], sizes = [8, 128], strides = [1, 1]} : vector<16x128xf32> to vector<8x128xf32>
    %6 = tpu.concatenate %4, %3, %5 in 0 : vector<8x128xf32>, vector<16x128xf32>, vector<8x128xf32> -> vector<32x128xf32>
    %7 = vector.extract_strided_slice %6 {offsets = [0, 0], sizes = [24, 128], strides = [1, 1]} : vector<32x128xf32> to vector<24x128xf32>
    %c31_i32 = arith.constant 31 : i32
    %8 = tpu.dynamic_rotate %6 by %c31_i32 dim 0 : vector<32x128xf32>, i32 -> vector<32x128xf32>
    %9 = vector.extract_strided_slice %8 {offsets = [0, 0], sizes = [24, 128], strides = [1, 1]} : vector<32x128xf32> to vector<24x128xf32>
    %c30_i32 = arith.constant 30 : i32
    %10 = tpu.dynamic_rotate %6 by %c30_i32 dim 0 : vector<32x128xf32>, i32 -> vector<32x128xf32>
    %11 = vector.extract_strided_slice %10 {offsets = [0, 0], sizes = [24, 128], strides = [1, 1]} : vector<32x128xf32> to vector<24x128xf32>
    %c29_i32 = arith.constant 29 : i32
    %12 = tpu.dynamic_rotate %6 by %c29_i32 dim 0 : vector<32x128xf32>, i32 -> vector<32x128xf32>
    %13 = vector.extract_strided_slice %12 {offsets = [0, 0], sizes = [24, 128], strides = [1, 1]} : vector<32x128xf32> to vector<24x128xf32>
    %c28_i32 = arith.constant 28 : i32
    %14 = tpu.dynamic_rotate %6 by %c28_i32 dim 0 : vector<32x128xf32>, i32 -> vector<32x128xf32>
    %15 = vector.extract_strided_slice %14 {offsets = [0, 0], sizes = [24, 128], strides = [1, 1]} : vector<32x128xf32> to vector<24x128xf32>
    %c27_i32 = arith.constant 27 : i32
    %16 = tpu.dynamic_rotate %6 by %c27_i32 dim 0 : vector<32x128xf32>, i32 -> vector<32x128xf32>
    %17 = vector.extract_strided_slice %16 {offsets = [0, 0], sizes = [24, 128], strides = [1, 1]} : vector<32x128xf32> to vector<24x128xf32>
    %c26_i32 = arith.constant 26 : i32
    %18 = tpu.dynamic_rotate %6 by %c26_i32 dim 0 : vector<32x128xf32>, i32 -> vector<32x128xf32>
    %19 = vector.extract_strided_slice %18 {offsets = [0, 0], sizes = [24, 128], strides = [1, 1]} : vector<32x128xf32> to vector<24x128xf32>
    %c25_i32 = arith.constant 25 : i32
    %20 = tpu.dynamic_rotate %6 by %c25_i32 dim 0 : vector<32x128xf32>, i32 -> vector<32x128xf32>
    %21 = vector.extract_strided_slice %20 {offsets = [0, 0], sizes = [24, 128], strides = [1, 1]} : vector<32x128xf32> to vector<24x128xf32>
    %c24_i32 = arith.constant 24 : i32
    %22 = tpu.dynamic_rotate %6 by %c24_i32 dim 0 : vector<32x128xf32>, i32 -> vector<32x128xf32>
    %23 = vector.extract_strided_slice %22 {offsets = [0, 0], sizes = [24, 128], strides = [1, 1]} : vector<32x128xf32> to vector<24x128xf32>
    %24 = tpu.concatenate %7, %9, %11, %13, %15, %17, %19, %21, %23 in 1 : vector<24x128xf32>, vector<24x128xf32>, vector<24x128xf32>, vector<24x128xf32>, vector<24x128xf32>, vector<24x128xf32>, vector<24x128xf32>, vector<24x128xf32>, vector<24x128xf32> -> vector<24x1152xf32>
    %c0_6 = arith.constant 0 : index
    %c0_7 = arith.constant 0 : index
    %25 = vector.load %arg4[%c0_6, %c0_7] : memref<1152x128xf32, #tpu.memory_space<vmem>>, vector<1152x128xf32>
    %cst = arith.constant dense<0.000000e+00> : vector<24x128xf32>
    %26 = tpu.matmul %24, %25, %cst {dimension_numbers = #tpu.dot_dimension_numbers<[1], [0], [0], [1], [0, 0, 1, 1], [], []>} : vector<24x1152xf32>, vector<1152x128xf32>, vector<24x128xf32> -> vector<24x128xf32>
    %c0_8 = arith.constant 0 : index
    %c0_9 = arith.constant 0 : index
    %27 = vector.load %arg5[%c0_8, %c0_9] : memref<1x128xf32, #tpu.memory_space<vmem>>, vector<1x128xf32>
    %28 = vector.broadcast %27 : vector<1x128xf32> to vector<24x128xf32>
    %29 = arith.addf %26, %28 : vector<24x128xf32>
    %cst_10 = arith.constant 0.000000e+00 : f32
    %30 = vector.broadcast %cst_10 : f32 to vector<24x128xf32>
    %31 = arith.maximumf %29, %30 : vector<24x128xf32>
    %c16_i32 = arith.constant 16 : i32
    %32 = arith.muli %arg1, %c16_i32 : i32
    %c4_i32 = arith.constant 4 : i32
    %33 = arith.subi %32, %c4_i32 : i32
    %34 = tpu.iota {dimensions = array<i32: 0>} : vector<24x1xi32>
    %35 = vector.broadcast %33 : i32 to vector<24x1xi32>
    %36 = arith.addi %35, %34 : vector<24x1xi32>
    %c0_i32 = arith.constant 0 : i32
    %37 = vector.broadcast %c0_i32 : i32 to vector<24x1xi32>
    %38 = arith.cmpi sge, %36, %37 : vector<24x1xi32>
    %c16_i32_11 = arith.constant 16 : i32
    %39 = vector.broadcast %c16_i32_11 : i32 to vector<24x1xi32>
    %40 = arith.cmpi slt, %36, %39 : vector<24x1xi32>
    %41 = arith.andi %38, %40 : vector<24x1xi1>
    %cst_12 = arith.constant 0.000000e+00 : f32
    %42 = vector.shape_cast %41 : vector<24x1xi1> to vector<24x1xi1>
    %43 = vector.broadcast %42 : vector<24x1xi1> to vector<24x128xi1>
    %44 = vector.broadcast %cst_12 : f32 to vector<24x128xf32>
    %45 = arith.select %43, %31, %44 : vector<24x128xi1>, vector<24x128xf32>
    %46 = vector.extract_strided_slice %45 {offsets = [0, 0], sizes = [16, 128], strides = [1, 1]} : vector<24x128xf32> to vector<16x128xf32>
    %c23_i32 = arith.constant 23 : i32
    %47 = tpu.dynamic_rotate %45 by %c23_i32 dim 0 : vector<24x128xf32>, i32 -> vector<24x128xf32>
    %48 = vector.extract_strided_slice %47 {offsets = [0, 0], sizes = [16, 128], strides = [1, 1]} : vector<24x128xf32> to vector<16x128xf32>
    %c22_i32 = arith.constant 22 : i32
    %49 = tpu.dynamic_rotate %45 by %c22_i32 dim 0 : vector<24x128xf32>, i32 -> vector<24x128xf32>
    %50 = vector.extract_strided_slice %49 {offsets = [0, 0], sizes = [16, 128], strides = [1, 1]} : vector<24x128xf32> to vector<16x128xf32>
    %c21_i32 = arith.constant 21 : i32
    %51 = tpu.dynamic_rotate %45 by %c21_i32 dim 0 : vector<24x128xf32>, i32 -> vector<24x128xf32>
    %52 = vector.extract_strided_slice %51 {offsets = [0, 0], sizes = [16, 128], strides = [1, 1]} : vector<24x128xf32> to vector<16x128xf32>
    %c20_i32 = arith.constant 20 : i32
    %53 = tpu.dynamic_rotate %45 by %c20_i32 dim 0 : vector<24x128xf32>, i32 -> vector<24x128xf32>
    %54 = vector.extract_strided_slice %53 {offsets = [0, 0], sizes = [16, 128], strides = [1, 1]} : vector<24x128xf32> to vector<16x128xf32>
    %c19_i32 = arith.constant 19 : i32
    %55 = tpu.dynamic_rotate %45 by %c19_i32 dim 0 : vector<24x128xf32>, i32 -> vector<24x128xf32>
    %56 = vector.extract_strided_slice %55 {offsets = [0, 0], sizes = [16, 128], strides = [1, 1]} : vector<24x128xf32> to vector<16x128xf32>
    %c18_i32 = arith.constant 18 : i32
    %57 = tpu.dynamic_rotate %45 by %c18_i32 dim 0 : vector<24x128xf32>, i32 -> vector<24x128xf32>
    %58 = vector.extract_strided_slice %57 {offsets = [0, 0], sizes = [16, 128], strides = [1, 1]} : vector<24x128xf32> to vector<16x128xf32>
    %c17_i32 = arith.constant 17 : i32
    %59 = tpu.dynamic_rotate %45 by %c17_i32 dim 0 : vector<24x128xf32>, i32 -> vector<24x128xf32>
    %60 = vector.extract_strided_slice %59 {offsets = [0, 0], sizes = [16, 128], strides = [1, 1]} : vector<24x128xf32> to vector<16x128xf32>
    %c16_i32_13 = arith.constant 16 : i32
    %61 = tpu.dynamic_rotate %45 by %c16_i32_13 dim 0 : vector<24x128xf32>, i32 -> vector<24x128xf32>
    %62 = vector.extract_strided_slice %61 {offsets = [0, 0], sizes = [16, 128], strides = [1, 1]} : vector<24x128xf32> to vector<16x128xf32>
    %63 = tpu.concatenate %46, %48, %50, %52, %54, %56, %58, %60, %62 in 1 : vector<16x128xf32>, vector<16x128xf32>, vector<16x128xf32>, vector<16x128xf32>, vector<16x128xf32>, vector<16x128xf32>, vector<16x128xf32>, vector<16x128xf32>, vector<16x128xf32> -> vector<16x1152xf32>
    %c0_14 = arith.constant 0 : index
    %c0_15 = arith.constant 0 : index
    %64 = vector.load %arg6[%c0_14, %c0_15] : memref<1152x128xf32, #tpu.memory_space<vmem>>, vector<1152x128xf32>
    %cst_16 = arith.constant dense<0.000000e+00> : vector<16x128xf32>
    %65 = tpu.matmul %63, %64, %cst_16 {dimension_numbers = #tpu.dot_dimension_numbers<[1], [0], [0], [1], [0, 0, 1, 1], [], []>} : vector<16x1152xf32>, vector<1152x128xf32>, vector<16x128xf32> -> vector<16x128xf32>
    %c0_17 = arith.constant 0 : index
    %c0_18 = arith.constant 0 : index
    %66 = vector.load %arg7[%c0_17, %c0_18] : memref<1x128xf32, #tpu.memory_space<vmem>>, vector<1x128xf32>
    %67 = vector.broadcast %66 : vector<1x128xf32> to vector<16x128xf32>
    %68 = arith.addf %65, %67 : vector<16x128xf32>
    %69 = arith.addf %68, %3 : vector<16x128xf32>
    %cst_19 = arith.constant 0.000000e+00 : f32
    %70 = vector.broadcast %cst_19 : f32 to vector<16x128xf32>
    %71 = arith.maximumf %69, %70 : vector<16x128xf32>
    %c0_20 = arith.constant 0 : index
    %c0_21 = arith.constant 0 : index
    %c0_22 = arith.constant 0 : index
    %72 = vector.load %arg8[%c0_20, %c0_21, %c0_22] : memref<1x16x128xf32, #tpu.memory_space<vmem>>, vector<1x16x128xf32>
    %73 = vector.shape_cast %72 : vector<1x16x128xf32> to vector<16x128xf32>
    %74 = vector.shape_cast %71 : vector<16x128xf32> to vector<1x16x128xf32>
    tpu.vector_store %arg8[%c0_20, %c0_21, %c0_22], %74 {strides = array<i32>} : memref<1x16x128xf32, #tpu.memory_space<vmem>>, vector<1x16x128xf32>,
    return
  }
  func.func @transform_0(%arg0: i32, %arg1: i32) -> (i32, i32, i32, i32) {
    %c0_i32 = arith.constant 0 : i32
    %c0_i32_0 = arith.constant 0 : i32
    %c0_i32_1 = arith.constant 0 : i32
    return %arg0, %arg1, %c0_i32, %c0_i32_0 : i32, i32, i32, i32
  }
  func.func @transform_1(%arg0: i32, %arg1: i32) -> (i32, i32, i32) {
    %c0_i32 = arith.constant 0 : i32
    %c0_i32_0 = arith.constant 0 : i32
    return %arg0, %arg1, %c0_i32 : i32, i32, i32
  }
  func.func @transform_2(%arg0: i32, %arg1: i32) -> (i32, i32) {
    %c0_i32 = arith.constant 0 : i32
    %c0_i32_0 = arith.constant 0 : i32
    %c0_i32_1 = arith.constant 0 : i32
    return %c0_i32, %c0_i32_0 : i32, i32
  }
  func.func @transform_3(%arg0: i32, %arg1: i32) -> (i32, i32) {
    %c0_i32 = arith.constant 0 : i32
    %c0_i32_0 = arith.constant 0 : i32
    %c0_i32_1 = arith.constant 0 : i32
    return %c0_i32, %c0_i32_0 : i32, i32
  }
  func.func @transform_4(%arg0: i32, %arg1: i32) -> (i32, i32) {
    %c0_i32 = arith.constant 0 : i32
    %c0_i32_0 = arith.constant 0 : i32
    %c0_i32_1 = arith.constant 0 : i32
    return %c0_i32, %c0_i32_0 : i32, i32
  }
  func.func @transform_5(%arg0: i32, %arg1: i32) -> (i32, i32) {
    %c0_i32 = arith.constant 0 : i32
    %c0_i32_0 = arith.constant 0 : i32
    %c0_i32_1 = arith.constant 0 : i32
    return %c0_i32, %c0_i32_0 : i32, i32
  }
  func.func @transform_6(%arg0: i32, %arg1: i32) -> (i32, i32, i32) {
    %c0_i32 = arith.constant 0 : i32
    %c0_i32_0 = arith.constant 0 : i32
    return %arg0, %arg1, %c0_i32 : i32, i32, i32
  }
}

</mosaic_0001>

<llo_original>
// kernel: basic_block_forward.1
$region0: #{basic_block_forward.1}
  #allocation0 [shape = 'u32[]', space=smem, size = 0x4, offset = 0x4, fixed_abs, tag = 'smem constant byte address 0x4 - core index']
  #allocation1 [shape = 'u32[72,128]{1,0:T(1,128)}', space=vmem, size = 0x9000, scoped, tag = 'internal scratch']
  %s0 = inlined_call_operand.vmem [shape: f32[2,1,16,128], index: 0, kind: input, shape index: {}]
  %s1 = inlined_call_operand.vmem [shape: f32[2,16,128], index: 1, kind: input, shape index: {}]
  %s2 = inlined_call_operand.vmem [shape: f32[1152,128], index: 2, kind: input, shape index: {}]
  %s3 = inlined_call_operand.vmem [shape: f32[1,128], index: 3, kind: input, shape index: {}]
  %s4 = inlined_call_operand.vmem [shape: f32[1152,128], index: 4, kind: input, shape index: {}]
  %s5 = inlined_call_operand.vmem [shape: f32[1,128], index: 5, kind: input, shape index: {}]
  %s6 = inlined_call_operand.vmem [shape: f32[2,16,128], index: 6, kind: output, shape index: {}]
  %s7 = sld [smem:[#allocation0]]
  $region57: #{basic_block_forward.1} parent=0
    _
  %s9 = ssub.s32 1, %s7
  %s10 = scalar_select 0, %s9, %s7
  loop: start=0, step=1, limit=4
  $region2: #{basic_block_forward.1} parent=0 // loop_pre_header
    _
  $region3: #{basic_block_forward.1} parent=0 // loop_header
    %s12 = sphi 0, %s16
    %p13 = scmp.ge.s32.totalorder %s12, 4
    %s19 = sphi 0, %s31
    %s20 = sphi 0, %s27
    %s21 = sphi 0, %s19
    %s22 = sphi 0, %s20
    %s23 = sphi 0, %s21
    %s24 = sphi 0, %s22
    %s36 = sphi 0, %s38
    %s39 = sphi 0, %s36
    %s40 = sphi 0, %s39
    %s56 = sphi 0, %s40
    %s64 = sphi 0, %s66
    %s67 = sphi 0, %s64
    %s68 = sphi 0, %s67
    %s84 = sphi 0, %s68
    %s88 = sphi 0, %s88
    %s90 = sphi 0, %s88
    %s91 = sphi 0, %s90
    %s105 = sphi 0, %s91
    %s109 = sphi 0, %s109
    %s111 = sphi 0, %s109
    %s112 = sphi 0, %s111
    %s126 = sphi 0, %s112
    %s130 = sphi 0, %s130
    %s132 = sphi 0, %s130
    %s133 = sphi 0, %s132
    %s147 = sphi 0, %s133
    %s151 = sphi 0, %s151
    %s153 = sphi 0, %s151
    %s154 = sphi 0, %s153
    %s168 = sphi 0, %s154
    %s176 = sphi 0, %s178
    %s179 = sphi 0, %s176
    %s180 = sphi 0, %s179
    %s196 = sphi 0, %s180
  $region4: #{basic_block_forward.1} parent=0 // loop_header_branch
    %15 = sbr.rel (%p13) target = $region8
  $region5: #{basic_block_forward.1} parent=0 // loop_body
    %s17 = ssub.s32 %s12, 1
    %s18 = ssub.s32 %s12, 2
    %s25 = sadd.s32 1, %s20
    %p26 = scmp.ge.s32.totalorder %s25, 1
    %s27 = scalar_select %p26, 0, %s25
    %s28 = sadd.s32 1, %s19
    %s29 = scalar_select %p26, %s28, %s19
    %p30 = scmp.ge.s32.totalorder %s29, 2
    %s31 = scalar_select %p30, 0, %s29
    %s32 = ssub.s32 %s19, %s31
    %s33 = ssub.s32 %s20, %s27
    %s34 = sor.u32 %s32, %s33
    %p35 = scmp.eq.s32.totalorder %s34, 0
    %s37 = sadd.s32 %s36, 1
    %s38 = scalar_select %p35, %s36, %s37
    %p41 = pneg %p35
    %p42 = scmp.eq.s32.totalorder %s12, 1
    %p43 = por %p41, %p42
    %p44 = scmp.ne.s32.totalorder %s36, %s39
    %p45 = scmp.eq.s32.totalorder %s12, 0
    %p46 = por %p44, %p45
    %p47 = scmp.ne.s32.totalorder %s36, %s39
    %p48 = scmp.eq.s32.totalorder %s17, 1
    %p49 = por %p47, %p48
    %p50 = scmp.ne.s32.totalorder %s39, %s40
    %p51 = scmp.eq.s32.totalorder %s17, 0
    %p52 = por %p50, %p51
    %p53 = scmp.ne.s32.totalorder %s39, %s40
    %p54 = scmp.eq.s32.totalorder %s18, 1
    %p55 = por %p53, %p54
    %p57 = scmp.ne.s32.totalorder %s40, %s56
    %p58 = scmp.eq.s32.totalorder %s18, 0
    %p59 = por %p57, %p58
    %s60 = ssub.s32 %s19, %s31
    %s61 = ssub.s32 %s20, %s27
    %s62 = sor.u32 %s60, %s61
    %p63 = scmp.eq.s32.totalorder %s62, 0
    %s65 = sadd.s32 %s64, 1
    %s66 = scalar_select %p63, %s64, %s65
    %p69 = pneg %p63
    %p70 = scmp.eq.s32.totalorder %s12, 1
    %p71 = por %p69, %p70
    %p72 = scmp.ne.s32.totalorder %s64, %s67
    %p73 = scmp.eq.s32.totalorder %s12, 0
    %p74 = por %p72, %p73
    %p75 = scmp.ne.s32.totalorder %s64, %s67
    %p76 = scmp.eq.s32.totalorder %s17, 1
    %p77 = por %p75, %p76
    %p78 = scmp.ne.s32.totalorder %s67, %s68
    %p79 = scmp.eq.s32.totalorder %s17, 0
    %p80 = por %p78, %p79
    %p81 = scmp.ne.s32.totalorder %s67, %s68
    %p82 = scmp.eq.s32.totalorder %s18, 1
    %p83 = por %p81, %p82
    %p85 = scmp.ne.s32.totalorder %s68, %s84
    %p86 = scmp.eq.s32.totalorder %s18, 0
    %p87 = por %p85, %p86
    %s89 = sadd.s32 %s88, 1
    %p92 = scmp.eq.s32.totalorder %s12, 1
    %p93 = scmp.ne.s32.totalorder %s88, %s90
    %p94 = scmp.eq.s32.totalorder %s12, 0
    %p95 = por %p93, %p94
    %p96 = scmp.ne.s32.totalorder %s88, %s90
    %p97 = scmp.eq.s32.totalorder %s17, 1
    %p98 = por %p96, %p97
    %p99 = scmp.ne.s32.totalorder %s90, %s91
    %p100 = scmp.eq.s32.totalorder %s17, 0
    %p101 = por %p99, %p100
    %p102 = scmp.ne.s32.totalorder %s90, %s91
    %p103 = scmp.eq.s32.totalorder %s18, 1
    %p104 = por %p102, %p103
    %p106 = scmp.ne.s32.totalorder %s91, %s105
    %p107 = scmp.eq.s32.totalorder %s18, 0
    %p108 = por %p106, %p107
    %s110 = sadd.s32 %s109, 1
    %p113 = scmp.eq.s32.totalorder %s12, 1
    %p114 = scmp.ne.s32.totalorder %s109, %s111
    %p115 = scmp.eq.s32.totalorder %s12, 0
    %p116 = por %p114, %p115
    %p117 = scmp.ne.s32.totalorder %s109, %s111
    %p118 = scmp.eq.s32.totalorder %s17, 1
    %p119 = por %p117, %p118
    %p120 = scmp.ne.s32.totalorder %s111, %s112
    %p121 = scmp.eq.s32.totalorder %s17, 0
    %p122 = por %p120, %p121
    %p123 = scmp.ne.s32.totalorder %s111, %s112
    %p124 = scmp.eq.s32.totalorder %s18, 1
    %p125 = por %p123, %p124
    %p127 = scmp.ne.s32.totalorder %s112, %s126
    %p128 = scmp.eq.s32.totalorder %s18, 0
    %p129 = por %p127, %p128
    %s131 = sadd.s32 %s130, 1
    %p134 = scmp.eq.s32.totalorder %s12, 1
    %p135 = scmp.ne.s32.totalorder %s130, %s132
    %p136 = scmp.eq.s32.totalorder %s12, 0
    %p137 = por %p135, %p136
    %p138 = scmp.ne.s32.totalorder %s130, %s132
    %p139 = scmp.eq.s32.totalorder %s17, 1
    %p140 = por %p138, %p139
    %p141 = scmp.ne.s32.totalorder %s132, %s133
    %p142 = scmp.eq.s32.totalorder %s17, 0
    %p143 = por %p141, %p142
    %p144 = scmp.ne.s32.totalorder %s132, %s133
    %p145 = scmp.eq.s32.totalorder %s18, 1
    %p146 = por %p144, %p145
    %p148 = scmp.ne.s32.totalorder %s133, %s147
    %p149 = scmp.eq.s32.totalorder %s18, 0
    %p150 = por %p148, %p149
    %s152 = sadd.s32 %s151, 1
    %p155 = scmp.eq.s32.totalorder %s12, 1
    %p156 = scmp.ne.s32.totalorder %s151, %s153
    %p157 = scmp.eq.s32.totalorder %s12, 0
    %p158 = por %p156, %p157
    %p159 = scmp.ne.s32.totalorder %s151, %s153
    %p160 = scmp.eq.s32.totalorder %s17, 1
    %p161 = por %p159, %p160
    %p162 = scmp.ne.s32.totalorder %s153, %s154
    %p163 = scmp.eq.s32.totalorder %s17, 0
    %p164 = por %p162, %p163
    %p165 = scmp.ne.s32.totalorder %s153, %s154
    %p166 = scmp.eq.s32.totalorder %s18, 1
    %p167 = por %p165, %p166
    %p169 = scmp.ne.s32.totalorder %s154, %s168
    %p170 = scmp.eq.s32.totalorder %s18, 0
    %p171 = por %p169, %p170
    %s172 = ssub.s32 %s19, %s31
    %s173 = ssub.s32 %s20, %s27
    %s174 = sor.u32 %s172, %s173
    %p175 = scmp.eq.s32.totalorder %s174, 0
    %s177 = sadd.s32 %s176, 1
    %s178 = scalar_select %p175, %s176, %s177
    %p181 = pneg %p175
    %p182 = scmp.eq.s32.totalorder %s12, 1
    %p183 = por %p181, %p182
    %p184 = scmp.ne.s32.totalorder %s176, %s179
    %p185 = scmp.eq.s32.totalorder %s12, 0
    %p186 = por %p184, %p185
    %p187 = scmp.ne.s32.totalorder %s176, %s179
    %p188 = scmp.eq.s32.totalorder %s17, 1
    %p189 = por %p187, %p188
    %p190 = scmp.ne.s32.totalorder %s179, %s180
    %p191 = scmp.eq.s32.totalorder %s17, 0
    %p192 = por %p190, %p191
    %p193 = scmp.ne.s32.totalorder %s179, %s180
    %p194 = scmp.eq.s32.totalorder %s18, 1
    %p195 = por %p193, %p194
    %p197 = scmp.ne.s32.totalorder %s180, %s196
    %p198 = scmp.eq.s32.totalorder %s18, 0
    %p199 = por %p197, %p198
    %p200 = scmp.le.s32.totalorder 1, %s12
    %p201 = scmp.lt.s32.totalorder %s12, 3
    %p202 = pnand %p200, %p201
    %p203 = pneg %p202
    // Predicated region
    $region9: #{basic_block_forward.1} parent=5 // pred_check
      _
    $region10: #{basic_block_forward.1} parent=5 // pred_check_branch
      %205 = sbr.rel (%p202) target = $region12
    $region11: #{basic_block_forward.1} parent=5 // pred_region
      %s206 = ssub.s32 %s12, 1
      // Predicated region
      $region13: #{basic_block_forward.1} parent=11 // pred_check
        %p207 = pneg %p101
      $region14: #{basic_block_forward.1} parent=11 // pred_check_branch
        %209 = sbr.rel (%p207) target = $region16
      $region15: #{basic_block_forward.1} parent=11 // pred_region
        _
      $region16: #{basic_block_forward.1} parent=11 // pred_fallthru
        _
      // Predicated region
      $region17: #{basic_block_forward.1} parent=11 // pred_check
        %p210 = pneg %p122
      $region18: #{basic_block_forward.1} parent=11 // pred_check_branch
        %212 = sbr.rel (%p210) target = $region20
      $region19: #{basic_block_forward.1} parent=11 // pred_region
        _
      $region20: #{basic_block_forward.1} parent=11 // pred_fallthru
        _
      // Predicated region
      $region21: #{basic_block_forward.1} parent=11 // pred_check
        %p213 = pneg %p143
      $region22: #{basic_block_forward.1} parent=11 // pred_check_branch
        %215 = sbr.rel (%p213) target = $region24
      $region23: #{basic_block_forward.1} parent=11 // pred_region
        _
      $region24: #{basic_block_forward.1} parent=11 // pred_fallthru
        _
      // Predicated region
      $region25: #{basic_block_forward.1} parent=11 // pred_check
        %p216 = pneg %p164
      $region26: #{basic_block_forward.1} parent=11 // pred_check_branch
        %218 = sbr.rel (%p216) target = $region28
      $region27: #{basic_block_forward.1} parent=11 // pred_region
        _
      $region28: #{basic_block_forward.1} parent=11 // pred_fallthru
        _
    $region12: #{basic_block_forward.1} parent=5 // pred_fallthru
      _
    %p219 = scmp.lt.s32.totalorder %s12, 2
    // Predicated region
    $region29: #{basic_block_forward.1} parent=5 // pred_check
      %p220 = pneg %p219
    $region30: #{basic_block_forward.1} parent=5 // pred_check_branch
      %222 = sbr.rel (%p220) target = $region32
    $region31: #{basic_block_forward.1} parent=5 // pred_region
      // Predicated region
      $region33: #{basic_block_forward.1} parent=31 // pred_check
        %p223 = pneg %p46
      $region34: #{basic_block_forward.1} parent=31 // pred_check_branch
        %225 = sbr.rel (%p223) target = $region36
      $region35: #{basic_block_forward.1} parent=31 // pred_region
        %p226 = scmp.lt.s32.totalorder %s19, 1
        %s227 = scalar_select %p226, %s19, 1
        %p228 = scmp.lt.s32.totalorder %s20, 0
        %s229 = scalar_select %p228, %s20, 0
        %s230 = smul.addr %s229, 2
        %s231 = smul.addr %s227, 2
        %s232 = sadd.s32 %s230, %s231
        %s233 = smul.addr %s232, 8
        %s234 = scalar_lea.vmem %s0, %s233
      $region36: #{basic_block_forward.1} parent=31 // pred_fallthru
        _
      // Predicated region
      $region37: #{basic_block_forward.1} parent=31 // pred_check
        %p235 = pneg %p74
      $region38: #{basic_block_forward.1} parent=31 // pred_check_branch
        %237 = sbr.rel (%p235) target = $region40
      $region39: #{basic_block_forward.1} parent=31 // pred_region
        %s238 = smul.u32 2, %s20
        %p239 = scmp.lt.s32.totalorder %s19, 1
        %s240 = scalar_select %p239, %s19, 1
        %p241 = scmp.lt.s32.totalorder %s238, 1
        %s242 = scalar_select %p241, %s238, 1
        %s243 = smul.addr %s240, 2
        %s244 = sadd.s32 %s242, %s243
        %s245 = smul.addr %s244, 8
        %s246 = scalar_lea.vmem %s1, %s245
        %s247 = smul.u32 2, %s20
      $region40: #{basic_block_forward.1} parent=31 // pred_fallthru
        _
    $region32: #{basic_block_forward.1} parent=5 // pred_fallthru
      _
    %p248 = scmp.le.s32.totalorder 1, %s12
    %p249 = scmp.lt.s32.totalorder %s12, 3
    %p250 = pnand %p248, %p249
    %p251 = pneg %p250
    // Predicated region
    $region41: #{basic_block_forward.1} parent=5 // pred_check
      _
    $region42: #{basic_block_forward.1} parent=5 // pred_check_branch
      %253 = sbr.rel (%p250) target = $region44
    $region43: #{basic_block_forward.1} parent=5 // pred_region
      %s254 = ssub.s32 %s12, 1
      %p255 = scmp.lt.s32.totalorder %s21, 1
      %s256 = scalar_select %p255, %s21, 1
      %p257 = scmp.lt.s32.totalorder %s22, 0
      %s258 = scalar_select %p257, %s22, 0
      %s259 = smul.addr %s258, 2
      %s260 = smul.addr %s256, 2
      %s261 = sadd.s32 %s259, %s260
      %s262 = smul.addr %s261, 8
      %s263 = scalar_lea.vmem %s0, %s262
      %p264 = pneg %p52
      %p265 = pneg %p49
      %s266 = smul.u32 2, %s22
      %p267 = scmp.lt.s32.totalorder %s21, 1
      %s268 = scalar_select %p267, %s21, 1
      %p269 = scmp.lt.s32.totalorder %s266, 1
      %s270 = scalar_select %p269, %s266, 1
      %s271 = smul.addr %s268, 2
      %s272 = sadd.s32 %s270, %s271
      %s273 = smul.addr %s272, 8
      %s274 = scalar_lea.vmem %s1, %s273
      %p275 = pneg %p80
      %p276 = pneg %p77
      %p277 = pneg %p101
      %p278 = pneg %p98
      %p279 = pneg %p122
      %p280 = pneg %p119
      %p281 = pneg %p143
      %p282 = pneg %p140
      %p283 = pneg %p164
      %p284 = pneg %p161
      %p285 = pneg %p192
      %p286 = pneg %p189
      %s287 = smul.u32 2, %s22
      %p288 = scmp.lt.s32.totalorder %s21, 1
      %s289 = scalar_select %p288, %s21, 1
      %p290 = scmp.lt.s32.totalorder %s287, 1
      %s291 = scalar_select %p290, %s287, 1
      %s292 = smul.addr %s289, 2
      %s293 = sadd.s32 %s291, %s292
      %s294 = smul.addr %s293, 8
      %s295 = scalar_lea.vmem %s6, %s294
      %p296 = scmp.lt.s32.totalorder %s21, 1
      %s297 = scalar_select %p296, %s21, 1
      %p298 = scmp.lt.s32.totalorder %s22, 0
      %s299 = scalar_select %p298, %s22, 0
      %s300 = smul.addr %s299, 2
      %s301 = smul.addr %s297, 2
      %s302 = sadd.s32 %s300, %s301
      %s303 = smul.addr %s302, 8
      %s304 = scalar_lea.vmem %s0, %s303
      %s305 = smul.u32 2, %s22
      %p306 = scmp.lt.s32.totalorder %s21, 1
      %s307 = scalar_select %p306, %s21, 1
      %p308 = scmp.lt.s32.totalorder %s305, 1
      %s309 = scalar_select %p308, %s305, 1
      %s310 = smul.addr %s307, 2
      %s311 = sadd.s32 %s309, %s310
      %s312 = smul.addr %s311, 8
      %s313 = scalar_lea.vmem %s1, %s312
      %s314 = smul.u32 2, %s22
      %s315 = smul.u32 2, %s22
      %p316 = scmp.lt.s32.totalorder %s21, 1
      %s317 = scalar_select %p316, %s21, 1
      %p318 = scmp.lt.s32.totalorder %s315, 1
      %s319 = scalar_select %p318, %s315, 1
      %s320 = smul.addr %s317, 2
      %s321 = sadd.s32 %s319, %s320
      %s322 = smul.addr %s321, 8
      %s323 = scalar_lea.vmem %s6, %s322
      %s324 = smul.u32 2, %s22
      %v325 = vld [vmem:[%s304] sm:$0xff]
      %v326 = vld [vmem:[%s304 + $0x8] sm:$0xff]
      %v327 = vld [vmem:[%s313] sm:$0xff]
      %v328 = vld [vmem:[%s313 + $0x8] sm:$0xff]
      %v329 = vrot.slane %v325, 1
      %v330 = vrot.slane %v327, 1
      %v331 = vrot.slane %v328, 1
      %v332 = vrot.slane %v326, 1
      %v333 = vlaneseq
      %v334 = vshrl.u32 %v333, 7
      %vm335 = vcmp.lt.s32.totalorder %v334, 7
      %v336 = vsel %vm335, %v331, %v332
      %v337 = vsel %vm335, %v330, %v331
      %v338 = vsel %vm335, %v329, %v330
      %v339 = vrot.slane %v325, 2
      %v340 = vrot.slane %v327, 2
      %v341 = vrot.slane %v328, 2
      %v342 = vrot.slane %v326, 2
      %vm343 = vcmp.lt.s32.totalorder %v334, 6
      %v344 = vsel %vm343, %v341, %v342
      %v345 = vsel %vm343, %v340, %v341
      %v346 = vsel %vm343, %v339, %v340
      %v347 = vrot.slane %v325, 3
      %v348 = vrot.slane %v327, 3
      %v349 = vrot.slane %v328, 3
      %v350 = vrot.slane %v326, 3
      %vm351 = vcmp.lt.s32.totalorder %v334, 5
      %v352 = vsel %vm351, %v349, %v350
      %v353 = vsel %vm351, %v348, %v349
      %v354 = vsel %vm351, %v347, %v348
      %v355 = vrot.slane %v325, 4
      %v356 = vrot.slane %v327, 4
      %v357 = vrot.slane %v328, 4
      %v358 = vrot.slane %v326, 4
      %vm359 = vcmp.lt.s32.totalorder %v334, 4
      %v360 = vsel %vm359, %v357, %v358
      %v361 = vsel %vm359, %v356, %v357
      %v362 = vsel %vm359, %v355, %v356
      %v363 = vrot.slane %v325, 5
      %v364 = vrot.slane %v327, 5
      %v365 = vrot.slane %v328, 5
      %v366 = vrot.slane %v326, 5
      %vm367 = vcmp.lt.s32.totalorder %v334, 3
      %v368 = vsel %vm367, %v365, %v366
      %v369 = vsel %vm367, %v364, %v365
      %v370 = vsel %vm367, %v363, %v364
      %v371 = vrot.slane %v325, 6
      %v372 = vrot.slane %v327, 6
      %v373 = vrot.slane %v328, 6
      %v374 = vrot.slane %v326, 6
      %vm375 = vcmp.lt.s32.totalorder %v334, 2
      %v376 = vsel %vm375, %v373, %v374
      %v377 = vsel %vm375, %v372, %v373
      %v378 = vsel %vm375, %v371, %v372
      %v379 = vrot.slane %v325, 7
      %v380 = vrot.slane %v327, 7
      %v381 = vrot.slane %v328, 7
      %v382 = vrot.slane %v326, 7
      %vm383 = vcmp.lt.s32.totalorder %v334, 1
      %v384 = vsel %vm383, %v381, %v382
      %v385 = vsel %vm383, %v380, %v381
      %v386 = vsel %vm383, %v379, %v380
      %v387 = vld [vmem:[%s2] sm:$0xff]
      %v388 = vld [vmem:[%s2 + $0x8] sm:$0xff]
      %v389 = vld [vmem:[%s2 + $0x10] sm:$0xff]
      %v390 = vld [vmem:[%s2 + $0x18] sm:$0xff]
      %v391 = vld [vmem:[%s2 + $0x20] sm:$0xff]
      %v392 = vld [vmem:[%s2 + $0x28] sm:$0xff]
      %v393 = vld [vmem:[%s2 + $0x30] sm:$0xff]
      %v394 = vld [vmem:[%s2 + $0x38] sm:$0xff]
      %v395 = vld [vmem:[%s2 + $0x40] sm:$0xff]
      %v396 = vld [vmem:[%s2 + $0x48] sm:$0xff]
      %v397 = vld [vmem:[%s2 + $0x50] sm:$0xff]
      %v398 = vld [vmem:[%s2 + $0x58] sm:$0xff]
      %v399 = vld [vmem:[%s2 + $0x60] sm:$0xff]
      %v400 = vld [vmem:[%s2 + $0x68] sm:$0xff]
      %v401 = vld [vmem:[%s2 + $0x70] sm:$0xff]
      %v402 = vld [vmem:[%s2 + $0x78] sm:$0xff]
      %v403 = vld [vmem:[%s2 + $0x80] sm:$0xff]
      %v404 = vld [vmem:[%s2 + $0x88] sm:$0xff]
      %v405 = vld [vmem:[%s2 + $0x90] sm:$0xff]
      %v406 = vld [vmem:[%s2 + $0x98] sm:$0xff]
      %v407 = vld [vmem:[%s2 + $0xa0] sm:$0xff]
      %v408 = vld [vmem:[%s2 + $0xa8] sm:$0xff]
      %v409 = vld [vmem:[%s2 + $0xb0] sm:$0xff]
      %v410 = vld [vmem:[%s2 + $0xb8] sm:$0xff]
      %v411 = vld [vmem:[%s2 + $0xc0] sm:$0xff]
      %v412 = vld [vmem:[%s2 + $0xc8] sm:$0xff]
      %v413 = vld [vmem:[%s2 + $0xd0] sm:$0xff]
      %v414 = vld [vmem:[%s2 + $0xd8] sm:$0xff]
      %v415 = vld [vmem:[%s2 + $0xe0] sm:$0xff]
      %v416 = vld [vmem:[%s2 + $0xe8] sm:$0xff]
      %v417 = vld [vmem:[%s2 + $0xf0] sm:$0xff]
      %v418 = vld [vmem:[%s2 + $0xf8] sm:$0xff]
      %v419 = vld [vmem:[%s2 + $0x100] sm:$0xff]
      %v420 = vld [vmem:[%s2 + $0x108] sm:$0xff]
      %v421 = vld [vmem:[%s2 + $0x110] sm:$0xff]
      %v422 = vld [vmem:[%s2 + $0x118] sm:$0xff]
      %v423 = vld [vmem:[%s2 + $0x120] sm:$0xff]
      %v424 = vld [vmem:[%s2 + $0x128] sm:$0xff]
      %v425 = vld [vmem:[%s2 + $0x130] sm:$0xff]
      %v426 = vld [vmem:[%s2 + $0x138] sm:$0xff]
      %v427 = vld [vmem:[%s2 + $0x140] sm:$0xff]
      %v428 = vld [vmem:[%s2 + $0x148] sm:$0xff]
      %v429 = vld [vmem:[%s2 + $0x150] sm:$0xff]
      %v430 = vld [vmem:[%s2 + $0x158] sm:$0xff]
      %v431 = vld [vmem:[%s2 + $0x160] sm:$0xff]
      %v432 = vld [vmem:[%s2 + $0x168] sm:$0xff]
      %v433 = vld [vmem:[%s2 + $0x170] sm:$0xff]
      %v434 = vld [vmem:[%s2 + $0x178] sm:$0xff]
      %v435 = vld [vmem:[%s2 + $0x180] sm:$0xff]
      %v436 = vld [vmem:[%s2 + $0x188] sm:$0xff]
      %v437 = vld [vmem:[%s2 + $0x190] sm:$0xff]
      %v438 = vld [vmem:[%s2 + $0x198] sm:$0xff]
      %v439 = vld [vmem:[%s2 + $0x1a0] sm:$0xff]
      %v440 = vld [vmem:[%s2 + $0x1a8] sm:$0xff]
      %v441 = vld [vmem:[%s2 + $0x1b0] sm:$0xff]
      %v442 = vld [vmem:[%s2 + $0x1b8] sm:$0xff]
      %v443 = vld [vmem:[%s2 + $0x1c0] sm:$0xff]
      %v444 = vld [vmem:[%s2 + $0x1c8] sm:$0xff]
      %v445 = vld [vmem:[%s2 + $0x1d0] sm:$0xff]
      %v446 = vld [vmem:[%s2 + $0x1d8] sm:$0xff]
      %v447 = vld [vmem:[%s2 + $0x1e0] sm:$0xff]
      %v448 = vld [vmem:[%s2 + $0x1e8] sm:$0xff]
      %v449 = vld [vmem:[%s2 + $0x1f0] sm:$0xff]
      %v450 = vld [vmem:[%s2 + $0x1f8] sm:$0xff]
      %v451 = vld [vmem:[%s2 + $0x200] sm:$0xff]
      %v452 = vld [vmem:[%s2 + $0x208] sm:$0xff]
      %v453 = vld [vmem:[%s2 + $0x210] sm:$0xff]
      %v454 = vld [vmem:[%s2 + $0x218] sm:$0xff]
      %v455 = vld [vmem:[%s2 + $0x220] sm:$0xff]
      %v456 = vld [vmem:[%s2 + $0x228] sm:$0xff]
      %v457 = vld [vmem:[%s2 + $0x230] sm:$0xff]
      %v458 = vld [vmem:[%s2 + $0x238] sm:$0xff]
      %v459 = vld [vmem:[%s2 + $0x240] sm:$0xff]
      %v460 = vld [vmem:[%s2 + $0x248] sm:$0xff]
      %v461 = vld [vmem:[%s2 + $0x250] sm:$0xff]
      %v462 = vld [vmem:[%s2 + $0x258] sm:$0xff]
      %v463 = vld [vmem:[%s2 + $0x260] sm:$0xff]
      %v464 = vld [vmem:[%s2 + $0x268] sm:$0xff]
      %v465 = vld [vmem:[%s2 + $0x270] sm:$0xff]
      %v466 = vld [vmem:[%s2 + $0x278] sm:$0xff]
      %v467 = vld [vmem:[%s2 + $0x280] sm:$0xff]
      %v468 = vld [vmem:[%s2 + $0x288] sm:$0xff]
      %v469 = vld [vmem:[%s2 + $0x290] sm:$0xff]
      %v470 = vld [vmem:[%s2 + $0x298] sm:$0xff]
      %v471 = vld [vmem:[%s2 + $0x2a0] sm:$0xff]
      %v472 = vld [vmem:[%s2 + $0x2a8] sm:$0xff]
      %v473 = vld [vmem:[%s2 + $0x2b0] sm:$0xff]
      %v474 = vld [vmem:[%s2 + $0x2b8] sm:$0xff]
      %v475 = vld [vmem:[%s2 + $0x2c0] sm:$0xff]
      %v476 = vld [vmem:[%s2 + $0x2c8] sm:$0xff]
      %v477 = vld [vmem:[%s2 + $0x2d0] sm:$0xff]
      %v478 = vld [vmem:[%s2 + $0x2d8] sm:$0xff]
      %v479 = vld [vmem:[%s2 + $0x2e0] sm:$0xff]
      %v480 = vld [vmem:[%s2 + $0x2e8] sm:$0xff]
      %v481 = vld [vmem:[%s2 + $0x2f0] sm:$0xff]
      %v482 = vld [vmem:[%s2 + $0x2f8] sm:$0xff]
      %v483 = vld [vmem:[%s2 + $0x300] sm:$0xff]
      %v484 = vld [vmem:[%s2 + $0x308] sm:$0xff]
      %v485 = vld [vmem:[%s2 + $0x310] sm:$0xff]
      %v486 = vld [vmem:[%s2 + $0x318] sm:$0xff]
      %v487 = vld [vmem:[%s2 + $0x320] sm:$0xff]
      %v488 = vld [vmem:[%s2 + $0x328] sm:$0xff]
      %v489 = vld [vmem:[%s2 + $0x330] sm:$0xff]
      %v490 = vld [vmem:[%s2 + $0x338] sm:$0xff]
      %v491 = vld [vmem:[%s2 + $0x340] sm:$0xff]
      %v492 = vld [vmem:[%s2 + $0x348] sm:$0xff]
      %v493 = vld [vmem:[%s2 + $0x350] sm:$0xff]
      %v494 = vld [vmem:[%s2 + $0x358] sm:$0xff]
      %v495 = vld [vmem:[%s2 + $0x360] sm:$0xff]
      %v496 = vld [vmem:[%s2 + $0x368] sm:$0xff]
      %v497 = vld [vmem:[%s2 + $0x370] sm:$0xff]
      %v498 = vld [vmem:[%s2 + $0x378] sm:$0xff]
      %v499 = vld [vmem:[%s2 + $0x380] sm:$0xff]
      %v500 = vld [vmem:[%s2 + $0x388] sm:$0xff]
      %v501 = vld [vmem:[%s2 + $0x390] sm:$0xff]
      %v502 = vld [vmem:[%s2 + $0x398] sm:$0xff]
      %v503 = vld [vmem:[%s2 + $0x3a0] sm:$0xff]
      %v504 = vld [vmem:[%s2 + $0x3a8] sm:$0xff]
      %v505 = vld [vmem:[%s2 + $0x3b0] sm:$0xff]
      %v506 = vld [vmem:[%s2 + $0x3b8] sm:$0xff]
      %v507 = vld [vmem:[%s2 + $0x3c0] sm:$0xff]
      %v508 = vld [vmem:[%s2 + $0x3c8] sm:$0xff]
      %v509 = vld [vmem:[%s2 + $0x3d0] sm:$0xff]
      %v510 = vld [vmem:[%s2 + $0x3d8] sm:$0xff]
      %v511 = vld [vmem:[%s2 + $0x3e0] sm:$0xff]
      %v512 = vld [vmem:[%s2 + $0x3e8] sm:$0xff]
      %v513 = vld [vmem:[%s2 + $0x3f0] sm:$0xff]
      %v514 = vld [vmem:[%s2 + $0x3f8] sm:$0xff]
      %v515 = vld [vmem:[%s2 + $0x400] sm:$0xff]
      %v516 = vld [vmem:[%s2 + $0x408] sm:$0xff]
      %v517 = vld [vmem:[%s2 + $0x410] sm:$0xff]
      %v518 = vld [vmem:[%s2 + $0x418] sm:$0xff]
      %v519 = vld [vmem:[%s2 + $0x420] sm:$0xff]
      %v520 = vld [vmem:[%s2 + $0x428] sm:$0xff]
      %v521 = vld [vmem:[%s2 + $0x430] sm:$0xff]
      %v522 = vld [vmem:[%s2 + $0x438] sm:$0xff]
      %v523 = vld [vmem:[%s2 + $0x440] sm:$0xff]
      %v524 = vld [vmem:[%s2 + $0x448] sm:$0xff]
      %v525 = vld [vmem:[%s2 + $0x450] sm:$0xff]
      %v526 = vld [vmem:[%s2 + $0x458] sm:$0xff]
      %v527 = vld [vmem:[%s2 + $0x460] sm:$0xff]
      %v528 = vld [vmem:[%s2 + $0x468] sm:$0xff]
      %v529 = vld [vmem:[%s2 + $0x470] sm:$0xff]
      %v530 = vld [vmem:[%s2 + $0x478] sm:$0xff]
      %v531 = vld [vmem:[%s3] sm:$0x1]
      %v533 = vperm.slane %v531, 0
      %535 = vmatpush.msra.mxu0 %v402
      %536 = vmatpush.msra.mxu0 %v401
      %537 = vmatpush.msra.mxu0 %v400
      %538 = vmatpush.msra.mxu0 %v399
      %539 = vmatpush.msra.mxu0 %v398
      %540 = vmatpush.msra.mxu0 %v397
      %541 = vmatpush.msra.mxu0 %v396
      %542 = vmatpush.msra.mxu0 %v395
      %543 = vmatpush.msra.mxu0 %v394
      %544 = vmatpush.msra.mxu0 %v393
      %545 = vmatpush.msra.mxu0 %v392
      %546 = vmatpush.msra.mxu0 %v391
      %547 = vmatpush.msra.mxu0 %v390
      %548 = vmatpush.msra.mxu0 %v389
      %549 = vmatpush.msra.mxu0 %v388
      %550 = vmatpush.msra.mxu0 %v387
      %551 = vmatmul.f32.gmra.mxu0 %v325
      %v552 = vpop.f32.mrf.mxu0
      %v553 = vadd.f32 %v533, %v552
      %554 = vmatmul.f32.gmra.mxu0 %v327
      %v555 = vpop.f32.mrf.mxu0
      %v556 = vadd.f32 %v533, %v555
      %557 = vmatmul.f32.gmra.mxu0 %v328
      %v558 = vpop.f32.mrf.mxu0
      %v559 = vadd.f32 %v533, %v558
      %560 = vdwg.mxu0
      %561 = vmatpush.msra.mxu0 %v418
      %562 = vmatpush.msra.mxu0 %v417
      %563 = vmatpush.msra.mxu0 %v416
      %564 = vmatpush.msra.mxu0 %v415
      %565 = vmatpush.msra.mxu0 %v414
      %566 = vmatpush.msra.mxu0 %v413
      %567 = vmatpush.msra.mxu0 %v412
      %568 = vmatpush.msra.mxu0 %v411
      %569 = vmatpush.msra.mxu0 %v410
      %570 = vmatpush.msra.mxu0 %v409
      %571 = vmatpush.msra.mxu0 %v408
      %572 = vmatpush.msra.mxu0 %v407
      %573 = vmatpush.msra.mxu0 %v406
      %574 = vmatpush.msra.mxu0 %v405
      %575 = vmatpush.msra.mxu0 %v404
      %576 = vmatpush.msra.mxu0 %v403
      %577 = vmatmul.f32.gmra.mxu0 %v338
      %v578 = vpop.f32.mrf.mxu0
      %v579 = vadd.f32 %v553, %v578
      %580 = vmatmul.f32.gmra.mxu0 %v337
      %v581 = vpop.f32.mrf.mxu0
      %v582 = vadd.f32 %v556, %v581
      %583 = vmatmul.f32.gmra.mxu0 %v336
      %v584 = vpop.f32.mrf.mxu0
      %v585 = vadd.f32 %v559, %v584
      %586 = vdwg.mxu0
      %587 = vmatpush.msra.mxu0 %v434
      %588 = vmatpush.msra.mxu0 %v433
      %589 = vmatpush.msra.mxu0 %v432
      %590 = vmatpush.msra.mxu0 %v431
      %591 = vmatpush.msra.mxu0 %v430
      %592 = vmatpush.msra.mxu0 %v429
      %593 = vmatpush.msra.mxu0 %v428
      %594 = vmatpush.msra.mxu0 %v427
      %595 = vmatpush.msra.mxu0 %v426
      %596 = vmatpush.msra.mxu0 %v425
      %597 = vmatpush.msra.mxu0 %v424
      %598 = vmatpush.msra.mxu0 %v423
      %599 = vmatpush.msra.mxu0 %v422
      %600 = vmatpush.msra.mxu0 %v421
      %601 = vmatpush.msra.mxu0 %v420
      %602 = vmatpush.msra.mxu0 %v419
      %603 = vmatmul.f32.gmra.mxu0 %v346
      %v604 = vpop.f32.mrf.mxu0
      %v605 = vadd.f32 %v579, %v604
      %606 = vmatmul.f32.gmra.mxu0 %v345
      %v607 = vpop.f32.mrf.mxu0
      %v608 = vadd.f32 %v582, %v607
      %609 = vmatmul.f32.gmra.mxu0 %v344
      %v610 = vpop.f32.mrf.mxu0
      %v611 = vadd.f32 %v585, %v610
      %612 = vdwg.mxu0
      %613 = vmatpush.msra.mxu0 %v450
      %614 = vmatpush.msra.mxu0 %v449
      %615 = vmatpush.msra.mxu0 %v448
      %616 = vmatpush.msra.mxu0 %v447
      %617 = vmatpush.msra.mxu0 %v446
      %618 = vmatpush.msra.mxu0 %v445
      %619 = vmatpush.msra.mxu0 %v444
      %620 = vmatpush.msra.mxu0 %v443
      %621 = vmatpush.msra.mxu0 %v442
      %622 = vmatpush.msra.mxu0 %v441
      %623 = vmatpush.msra.mxu0 %v440
      %624 = vmatpush.msra.mxu0 %v439
      %625 = vmatpush.msra.mxu0 %v438
      %626 = vmatpush.msra.mxu0 %v437
      %627 = vmatpush.msra.mxu0 %v436
      %628 = vmatpush.msra.mxu0 %v435
      %629 = vmatmul.f32.gmra.mxu0 %v354
      %v630 = vpop.f32.mrf.mxu0
      %v631 = vadd.f32 %v605, %v630
      %632 = vmatmul.f32.gmra.mxu0 %v353
      %v633 = vpop.f32.mrf.mxu0
      %v634 = vadd.f32 %v608, %v633
      %635 = vmatmul.f32.gmra.mxu0 %v352
      %v636 = vpop.f32.mrf.mxu0
      %v637 = vadd.f32 %v611, %v636
      %638 = vdwg.mxu0
      %639 = vmatpush.msra.mxu0 %v466
      %640 = vmatpush.msra.mxu0 %v465
      %641 = vmatpush.msra.mxu0 %v464
      %642 = vmatpush.msra.mxu0 %v463
      %643 = vmatpush.msra.mxu0 %v462
      %644 = vmatpush.msra.mxu0 %v461
      %645 = vmatpush.msra.mxu0 %v460
      %646 = vmatpush.msra.mxu0 %v459
      %647 = vmatpush.msra.mxu0 %v458
      %648 = vmatpush.msra.mxu0 %v457
      %649 = vmatpush.msra.mxu0 %v456
      %650 = vmatpush.msra.mxu0 %v455
      %651 = vmatpush.msra.mxu0 %v454
      %652 = vmatpush.msra.mxu0 %v453
      %653 = vmatpush.msra.mxu0 %v452
      %654 = vmatpush.msra.mxu0 %v451
      %655 = vmatmul.f32.gmra.mxu0 %v362
      %v656 = vpop.f32.mrf.mxu0
      %v657 = vadd.f32 %v631, %v656
      %658 = vmatmul.f32.gmra.mxu0 %v361
      %v659 = vpop.f32.mrf.mxu0
      %v660 = vadd.f32 %v634, %v659
      %661 = vmatmul.f32.gmra.mxu0 %v360
      %v662 = vpop.f32.mrf.mxu0
      %v663 = vadd.f32 %v637, %v662
      %664 = vdwg.mxu0
      %665 = vmatpush.msra.mxu0 %v482
      %666 = vmatpush.msra.mxu0 %v481
      %667 = vmatpush.msra.mxu0 %v480
      %668 = vmatpush.msra.mxu0 %v479
      %669 = vmatpush.msra.mxu0 %v478
      %670 = vmatpush.msra.mxu0 %v477
      %671 = vmatpush.msra.mxu0 %v476
      %672 = vmatpush.msra.mxu0 %v475
      %673 = vmatpush.msra.mxu0 %v474
      %674 = vmatpush.msra.mxu0 %v473
      %675 = vmatpush.msra.mxu0 %v472
      %676 = vmatpush.msra.mxu0 %v471
      %677 = vmatpush.msra.mxu0 %v470
      %678 = vmatpush.msra.mxu0 %v469
      %679 = vmatpush.msra.mxu0 %v468
      %680 = vmatpush.msra.mxu0 %v467
      %681 = vmatmul.f32.gmra.mxu0 %v370
      %v682 = vpop.f32.mrf.mxu0
      %v683 = vadd.f32 %v657, %v682
      %684 = vmatmul.f32.gmra.mxu0 %v369
      %v685 = vpop.f32.mrf.mxu0
      %v686 = vadd.f32 %v660, %v685
      %687 = vmatmul.f32.gmra.mxu0 %v368
      %v688 = vpop.f32.mrf.mxu0
      %v689 = vadd.f32 %v663, %v688
      %690 = vdwg.mxu0
      %691 = vmatpush.msra.mxu0 %v498
      %692 = vmatpush.msra.mxu0 %v497
      %693 = vmatpush.msra.mxu0 %v496
      %694 = vmatpush.msra.mxu0 %v495
      %695 = vmatpush.msra.mxu0 %v494
      %696 = vmatpush.msra.mxu0 %v493
      %697 = vmatpush.msra.mxu0 %v492
      %698 = vmatpush.msra.mxu0 %v491
      %699 = vmatpush.msra.mxu0 %v490
      %700 = vmatpush.msra.mxu0 %v489
      %701 = vmatpush.msra.mxu0 %v488
      %702 = vmatpush.msra.mxu0 %v487
      %703 = vmatpush.msra.mxu0 %v486
      %704 = vmatpush.msra.mxu0 %v485
      %705 = vmatpush.msra.mxu0 %v484
      %706 = vmatpush.msra.mxu0 %v483
      %707 = vmatmul.f32.gmra.mxu0 %v378
      %v708 = vpop.f32.mrf.mxu0
      %v709 = vadd.f32 %v683, %v708
      %710 = vmatmul.f32.gmra.mxu0 %v377
      %v711 = vpop.f32.mrf.mxu0
      %v712 = vadd.f32 %v686, %v711
      %713 = vmatmul.f32.gmra.mxu0 %v376
      %v714 = vpop.f32.mrf.mxu0
      %v715 = vadd.f32 %v689, %v714
      %716 = vdwg.mxu0
      %717 = vmatpush.msra.mxu0 %v514
      %718 = vmatpush.msra.mxu0 %v513
      %719 = vmatpush.msra.mxu0 %v512
      %720 = vmatpush.msra.mxu0 %v511
      %721 = vmatpush.msra.mxu0 %v510
      %722 = vmatpush.msra.mxu0 %v509
      %723 = vmatpush.msra.mxu0 %v508
      %724 = vmatpush.msra.mxu0 %v507
      %725 = vmatpush.msra.mxu0 %v506
      %726 = vmatpush.msra.mxu0 %v505
      %727 = vmatpush.msra.mxu0 %v504
      %728 = vmatpush.msra.mxu0 %v503
      %729 = vmatpush.msra.mxu0 %v502
      %730 = vmatpush.msra.mxu0 %v501
      %731 = vmatpush.msra.mxu0 %v500
      %732 = vmatpush.msra.mxu0 %v499
      %733 = vmatmul.f32.gmra.mxu0 %v386
      %v734 = vpop.f32.mrf.mxu0
      %v735 = vadd.f32 %v709, %v734
      %736 = vmatmul.f32.gmra.mxu0 %v385
      %v737 = vpop.f32.mrf.mxu0
      %v738 = vadd.f32 %v712, %v737
      %739 = vmatmul.f32.gmra.mxu0 %v384
      %v740 = vpop.f32.mrf.mxu0
      %v741 = vadd.f32 %v715, %v740
      %742 = vdwg.mxu0
      %743 = vmatpush.msra.mxu0 %v530
      %744 = vmatpush.msra.mxu0 %v529
      %745 = vmatpush.msra.mxu0 %v528
      %746 = vmatpush.msra.mxu0 %v527
      %747 = vmatpush.msra.mxu0 %v526
      %748 = vmatpush.msra.mxu0 %v525
      %749 = vmatpush.msra.mxu0 %v524
      %750 = vmatpush.msra.mxu0 %v523
      %751 = vmatpush.msra.mxu0 %v522
      %752 = vmatpush.msra.mxu0 %v521
      %753 = vmatpush.msra.mxu0 %v520
      %754 = vmatpush.msra.mxu0 %v519
      %755 = vmatpush.msra.mxu0 %v518
      %756 = vmatpush.msra.mxu0 %v517
      %757 = vmatpush.msra.mxu0 %v516
      %758 = vmatpush.msra.mxu0 %v515
      %759 = vmatmul.f32.gmra.mxu0 %v327
      %v760 = vpop.f32.mrf.mxu0
      %v761 = vadd.f32 %v735, %v760
      %762 = vmatmul.f32.gmra.mxu0 %v328
      %v763 = vpop.f32.mrf.mxu0
      %v764 = vadd.f32 %v738, %v763
      %765 = vmatmul.f32.gmra.mxu0 %v326
      %v766 = vpop.f32.mrf.mxu0
      %v767 = vadd.f32 %v741, %v766
      %768 = vdwg.mxu0
      %v769 = vmax.f32 %v761, 0.0
      %v770 = vmax.f32 %v764, 0.0
      %v771 = vmax.f32 %v767, 0.0
      %s772 = smul.u32 %s22, 16
      %s773 = ssub.s32 %s772, 4
      %v774 = vadd.s32 %v334, 8
      %v775 = vadd.s32 %v334, 16
      %v776 = vstv %s773
      %v777 = vadd.s32 %v776, %v334
      %v778 = vadd.s32 %v776, %v774
      %v779 = vadd.s32 %v776, %v775
      %vm780 = vcmp.ge.s32.totalorder %v777, 0
      %vm781 = vcmp.ge.s32.totalorder %v778, 0
      %vm782 = vcmp.ge.s32.totalorder %v779, 0
      %vm783 = vcmp.lt.s32.totalorder %v777, 16
      %vm784 = vcmp.lt.s32.totalorder %v778, 16
      %vm785 = vcmp.lt.s32.totalorder %v779, 16
      %vm786 = vmand %vm780, %vm783
      %vm787 = vmand %vm781, %vm784
      %vm788 = vmand %vm782, %vm785
      %v789 = vsel %vm786, 1, 0
      %v790 = vsel %vm787, 1, 0
      %v791 = vsel %vm788, 1, 0
      %vm792 = vcmp.eq.s32.totalorder %v789, 1
      %vm793 = vcmp.eq.s32.totalorder %v790, 1
      %vm794 = vcmp.eq.s32.totalorder %v791, 1
      %v795 = vsel %vm792, %v769, 0.0
      %v796 = vsel %vm793, %v770, 0.0
      %v797 = vsel %vm794, %v771, 0.0
      %v798 = vrot.slane %v795, 1
      %v799 = vrot.slane %v796, 1
      %v800 = vrot.slane %v797, 1
      %v801 = vsel %vm335, %v799, %v800
      %v802 = vsel %vm335, %v798, %v799
      %v803 = vrot.slane %v795, 2
      %v804 = vrot.slane %v796, 2
      %v805 = vrot.slane %v797, 2
      %v806 = vsel %vm343, %v804, %v805
      %v807 = vsel %vm343, %v803, %v804
      %v808 = vrot.slane %v795, 3
      %v809 = vrot.slane %v796, 3
      %v810 = vrot.slane %v797, 3
      %v811 = vsel %vm351, %v809, %v810
      %v812 = vsel %vm351, %v808, %v809
      %v813 = vrot.slane %v795, 4
      %v814 = vrot.slane %v796, 4
      %v815 = vrot.slane %v797, 4
      %v816 = vsel %vm359, %v814, %v815
      %v817 = vsel %vm359, %v813, %v814
      %v818 = vrot.slane %v795, 5
      %v819 = vrot.slane %v796, 5
      %v820 = vrot.slane %v797, 5
      %v821 = vsel %vm367, %v819, %v820
      %v822 = vsel %vm367, %v818, %v819
      %v823 = vrot.slane %v795, 6
      %v824 = vrot.slane %v796, 6
      %v825 = vrot.slane %v797, 6
      %v826 = vsel %vm375, %v824, %v825
      %v827 = vsel %vm375, %v823, %v824
      %v828 = vrot.slane %v795, 7
      %v829 = vrot.slane %v796, 7
      %v830 = vrot.slane %v797, 7
      %v831 = vsel %vm383, %v829, %v830
      %v832 = vsel %vm383, %v828, %v829
      %v833 = vld [vmem:[%s4] sm:$0xff]
      %v834 = vld [vmem:[%s4 + $0x8] sm:$0xff]
      %v835 = vld [vmem:[%s4 + $0x10] sm:$0xff]
      %v836 = vld [vmem:[%s4 + $0x18] sm:$0xff]
      %v837 = vld [vmem:[%s4 + $0x20] sm:$0xff]
      %v838 = vld [vmem:[%s4 + $0x28] sm:$0xff]
      %v839 = vld [vmem:[%s4 + $0x30] sm:$0xff]
      %v840 = vld [vmem:[%s4 + $0x38] sm:$0xff]
      %v841 = vld [vmem:[%s4 + $0x40] sm:$0xff]
      %v842 = vld [vmem:[%s4 + $0x48] sm:$0xff]
      %v843 = vld [vmem:[%s4 + $0x50] sm:$0xff]
      %v844 = vld [vmem:[%s4 + $0x58] sm:$0xff]
      %v845 = vld [vmem:[%s4 + $0x60] sm:$0xff]
      %v846 = vld [vmem:[%s4 + $0x68] sm:$0xff]
      %v847 = vld [vmem:[%s4 + $0x70] sm:$0xff]
      %v848 = vld [vmem:[%s4 + $0x78] sm:$0xff]
      %v849 = vld [vmem:[%s4 + $0x80] sm:$0xff]
      %v850 = vld [vmem:[%s4 + $0x88] sm:$0xff]
      %v851 = vld [vmem:[%s4 + $0x90] sm:$0xff]
      %v852 = vld [vmem:[%s4 + $0x98] sm:$0xff]
      %v853 = vld [vmem:[%s4 + $0xa0] sm:$0xff]
      %v854 = vld [vmem:[%s4 + $0xa8] sm:$0xff]
      %v855 = vld [vmem:[%s4 + $0xb0] sm:$0xff]
      %v856 = vld [vmem:[%s4 + $0xb8] sm:$0xff]
      %v857 = vld [vmem:[%s4 + $0xc0] sm:$0xff]
      %v858 = vld [vmem:[%s4 + $0xc8] sm:$0xff]
      %v859 = vld [vmem:[%s4 + $0xd0] sm:$0xff]
      %v860 = vld [vmem:[%s4 + $0xd8] sm:$0xff]
      %v861 = vld [vmem:[%s4 + $0xe0] sm:$0xff]
      %v862 = vld [vmem:[%s4 + $0xe8] sm:$0xff]
      %v863 = vld [vmem:[%s4 + $0xf0] sm:$0xff]
      %v864 = vld [vmem:[%s4 + $0xf8] sm:$0xff]
      %v865 = vld [vmem:[%s4 + $0x100] sm:$0xff]
      %v866 = vld [vmem:[%s4 + $0x108] sm:$0xff]
      %v867 = vld [vmem:[%s4 + $0x110] sm:$0xff]
      %v868 = vld [vmem:[%s4 + $0x118] sm:$0xff]
      %v869 = vld [vmem:[%s4 + $0x120] sm:$0xff]
      %v870 = vld [vmem:[%s4 + $0x128] sm:$0xff]
      %v871 = vld [vmem:[%s4 + $0x130] sm:$0xff]
      %v872 = vld [vmem:[%s4 + $0x138] sm:$0xff]
      %v873 = vld [vmem:[%s4 + $0x140] sm:$0xff]
      %v874 = vld [vmem:[%s4 + $0x148] sm:$0xff]
      %v875 = vld [vmem:[%s4 + $0x150] sm:$0xff]
      %v876 = vld [vmem:[%s4 + $0x158] sm:$0xff]
      %v877 = vld [vmem:[%s4 + $0x160] sm:$0xff]
      %v878 = vld [vmem:[%s4 + $0x168] sm:$0xff]
      %v879 = vld [vmem:[%s4 + $0x170] sm:$0xff]
      %v880 = vld [vmem:[%s4 + $0x178] sm:$0xff]
      %v881 = vld [vmem:[%s4 + $0x180] sm:$0xff]
      %v882 = vld [vmem:[%s4 + $0x188] sm:$0xff]
      %v883 = vld [vmem:[%s4 + $0x190] sm:$0xff]
      %v884 = vld [vmem:[%s4 + $0x198] sm:$0xff]
      %v885 = vld [vmem:[%s4 + $0x1a0] sm:$0xff]
      %v886 = vld [vmem:[%s4 + $0x1a8] sm:$0xff]
      %v887 = vld [vmem:[%s4 + $0x1b0] sm:$0xff]
      %v888 = vld [vmem:[%s4 + $0x1b8] sm:$0xff]
      %v889 = vld [vmem:[%s4 + $0x1c0] sm:$0xff]
      %v890 = vld [vmem:[%s4 + $0x1c8] sm:$0xff]
      %v891 = vld [vmem:[%s4 + $0x1d0] sm:$0xff]
      %v892 = vld [vmem:[%s4 + $0x1d8] sm:$0xff]
      %v893 = vld [vmem:[%s4 + $0x1e0] sm:$0xff]
      %v894 = vld [vmem:[%s4 + $0x1e8] sm:$0xff]
      %v895 = vld [vmem:[%s4 + $0x1f0] sm:$0xff]
      %v896 = vld [vmem:[%s4 + $0x1f8] sm:$0xff]
      %v897 = vld [vmem:[%s4 + $0x200] sm:$0xff]
      %v898 = vld [vmem:[%s4 + $0x208] sm:$0xff]
      %v899 = vld [vmem:[%s4 + $0x210] sm:$0xff]
      %v900 = vld [vmem:[%s4 + $0x218] sm:$0xff]
      %v901 = vld [vmem:[%s4 + $0x220] sm:$0xff]
      %v902 = vld [vmem:[%s4 + $0x228] sm:$0xff]
      %v903 = vld [vmem:[%s4 + $0x230] sm:$0xff]
      %v904 = vld [vmem:[%s4 + $0x238] sm:$0xff]
      %v905 = vld [vmem:[%s4 + $0x240] sm:$0xff]
      %v906 = vld [vmem:[%s4 + $0x248] sm:$0xff]
      %v907 = vld [vmem:[%s4 + $0x250] sm:$0xff]
      %v908 = vld [vmem:[%s4 + $0x258] sm:$0xff]
      %v909 = vld [vmem:[%s4 + $0x260] sm:$0xff]
      %v910 = vld [vmem:[%s4 + $0x268] sm:$0xff]
      %v911 = vld [vmem:[%s4 + $0x270] sm:$0xff]
      %v912 = vld [vmem:[%s4 + $0x278] sm:$0xff]
      %v913 = vld [vmem:[%s4 + $0x280] sm:$0xff]
      %v914 = vld [vmem:[%s4 + $0x288] sm:$0xff]
      %v915 = vld [vmem:[%s4 + $0x290] sm:$0xff]
      %v916 = vld [vmem:[%s4 + $0x298] sm:$0xff]
      %v917 = vld [vmem:[%s4 + $0x2a0] sm:$0xff]
      %v918 = vld [vmem:[%s4 + $0x2a8] sm:$0xff]
      %v919 = vld [vmem:[%s4 + $0x2b0] sm:$0xff]
      %v920 = vld [vmem:[%s4 + $0x2b8] sm:$0xff]
      %v921 = vld [vmem:[%s4 + $0x2c0] sm:$0xff]
      %v922 = vld [vmem:[%s4 + $0x2c8] sm:$0xff]
      %v923 = vld [vmem:[%s4 + $0x2d0] sm:$0xff]
      %v924 = vld [vmem:[%s4 + $0x2d8] sm:$0xff]
      %v925 = vld [vmem:[%s4 + $0x2e0] sm:$0xff]
      %v926 = vld [vmem:[%s4 + $0x2e8] sm:$0xff]
      %v927 = vld [vmem:[%s4 + $0x2f0] sm:$0xff]
      %v928 = vld [vmem:[%s4 + $0x2f8] sm:$0xff]
      %v929 = vld [vmem:[%s4 + $0x300] sm:$0xff]
      %v930 = vld [vmem:[%s4 + $0x308] sm:$0xff]
      %v931 = vld [vmem:[%s4 + $0x310] sm:$0xff]
      %v932 = vld [vmem:[%s4 + $0x318] sm:$0xff]
      %v933 = vld [vmem:[%s4 + $0x320] sm:$0xff]
      %v934 = vld [vmem:[%s4 + $0x328] sm:$0xff]
      %v935 = vld [vmem:[%s4 + $0x330] sm:$0xff]
      %v936 = vld [vmem:[%s4 + $0x338] sm:$0xff]
      %v937 = vld [vmem:[%s4 + $0x340] sm:$0xff]
      %v938 = vld [vmem:[%s4 + $0x348] sm:$0xff]
      %v939 = vld [vmem:[%s4 + $0x350] sm:$0xff]
      %v940 = vld [vmem:[%s4 + $0x358] sm:$0xff]
      %v941 = vld [vmem:[%s4 + $0x360] sm:$0xff]
      %v942 = vld [vmem:[%s4 + $0x368] sm:$0xff]
      %v943 = vld [vmem:[%s4 + $0x370] sm:$0xff]
      %v944 = vld [vmem:[%s4 + $0x378] sm:$0xff]
      %v945 = vld [vmem:[%s4 + $0x380] sm:$0xff]
      %v946 = vld [vmem:[%s4 + $0x388] sm:$0xff]
      %v947 = vld [vmem:[%s4 + $0x390] sm:$0xff]
      %v948 = vld [vmem:[%s4 + $0x398] sm:$0xff]
      %v949 = vld [vmem:[%s4 + $0x3a0] sm:$0xff]
      %v950 = vld [vmem:[%s4 + $0x3a8] sm:$0xff]
      %v951 = vld [vmem:[%s4 + $0x3b0] sm:$0xff]
      %v952 = vld [vmem:[%s4 + $0x3b8] sm:$0xff]
      %v953 = vld [vmem:[%s4 + $0x3c0] sm:$0xff]
      %v954 = vld [vmem:[%s4 + $0x3c8] sm:$0xff]
      %v955 = vld [vmem:[%s4 + $0x3d0] sm:$0xff]
      %v956 = vld [vmem:[%s4 + $0x3d8] sm:$0xff]
      %v957 = vld [vmem:[%s4 + $0x3e0] sm:$0xff]
      %v958 = vld [vmem:[%s4 + $0x3e8] sm:$0xff]
      %v959 = vld [vmem:[%s4 + $0x3f0] sm:$0xff]
      %v960 = vld [vmem:[%s4 + $0x3f8] sm:$0xff]
      %v961 = vld [vmem:[%s4 + $0x400] sm:$0xff]
      %v962 = vld [vmem:[%s4 + $0x408] sm:$0xff]
      %v963 = vld [vmem:[%s4 + $0x410] sm:$0xff]
      %v964 = vld [vmem:[%s4 + $0x418] sm:$0xff]
      %v965 = vld [vmem:[%s4 + $0x420] sm:$0xff]
      %v966 = vld [vmem:[%s4 + $0x428] sm:$0xff]
      %v967 = vld [vmem:[%s4 + $0x430] sm:$0xff]
      %v968 = vld [vmem:[%s4 + $0x438] sm:$0xff]
      %v969 = vld [vmem:[%s4 + $0x440] sm:$0xff]
      %v970 = vld [vmem:[%s4 + $0x448] sm:$0xff]
      %v971 = vld [vmem:[%s4 + $0x450] sm:$0xff]
      %v972 = vld [vmem:[%s4 + $0x458] sm:$0xff]
      %v973 = vld [vmem:[%s4 + $0x460] sm:$0xff]
      %v974 = vld [vmem:[%s4 + $0x468] sm:$0xff]
      %v975 = vld [vmem:[%s4 + $0x470] sm:$0xff]
      %v976 = vld [vmem:[%s4 + $0x478] sm:$0xff]
      %v977 = vld [vmem:[%s5] sm:$0x1]
      %v979 = vperm.slane %v977, 0
      %981 = vmatpush.msra.mxu0 %v848
      %982 = vmatpush.msra.mxu0 %v847
      %983 = vmatpush.msra.mxu0 %v846
      %984 = vmatpush.msra.mxu0 %v845
      %985 = vmatpush.msra.mxu0 %v844
      %986 = vmatpush.msra.mxu0 %v843
      %987 = vmatpush.msra.mxu0 %v842
      %988 = vmatpush.msra.mxu0 %v841
      %989 = vmatpush.msra.mxu0 %v840
      %990 = vmatpush.msra.mxu0 %v839
      %991 = vmatpush.msra.mxu0 %v838
      %992 = vmatpush.msra.mxu0 %v837
      %993 = vmatpush.msra.mxu0 %v836
      %994 = vmatpush.msra.mxu0 %v835
      %995 = vmatpush.msra.mxu0 %v834
      %996 = vmatpush.msra.mxu0 %v833
      %997 = vmatmul.f32.gmra.mxu0 %v795
      %v998 = vpop.f32.mrf.mxu0
      %v999 = vadd.f32 %v979, %v998
      %1000 = vmatmul.f32.gmra.mxu0 %v796
      %v1001 = vpop.f32.mrf.mxu0
      %v1002 = vadd.f32 %v979, %v1001
      %1003 = vdwg.mxu0
      %1004 = vmatpush.msra.mxu0 %v864
      %1005 = vmatpush.msra.mxu0 %v863
      %1006 = vmatpush.msra.mxu0 %v862
      %1007 = vmatpush.msra.mxu0 %v861
      %1008 = vmatpush.msra.mxu0 %v860
      %1009 = vmatpush.msra.mxu0 %v859
      %1010 = vmatpush.msra.mxu0 %v858
      %1011 = vmatpush.msra.mxu0 %v857
      %1012 = vmatpush.msra.mxu0 %v856
      %1013 = vmatpush.msra.mxu0 %v855
      %1014 = vmatpush.msra.mxu0 %v854
      %1015 = vmatpush.msra.mxu0 %v853
      %1016 = vmatpush.msra.mxu0 %v852
      %1017 = vmatpush.msra.mxu0 %v851
      %1018 = vmatpush.msra.mxu0 %v850
      %1019 = vmatpush.msra.mxu0 %v849
      %1020 = vmatmul.f32.gmra.mxu0 %v802
      %v1021 = vpop.f32.mrf.mxu0
      %v1022 = vadd.f32 %v999, %v1021
      %1023 = vmatmul.f32.gmra.mxu0 %v801
      %v1024 = vpop.f32.mrf.mxu0
      %v1025 = vadd.f32 %v1002, %v1024
      %1026 = vdwg.mxu0
      %1027 = vmatpush.msra.mxu0 %v880
      %1028 = vmatpush.msra.mxu0 %v879
      %1029 = vmatpush.msra.mxu0 %v878
      %1030 = vmatpush.msra.mxu0 %v877
      %1031 = vmatpush.msra.mxu0 %v876
      %1032 = vmatpush.msra.mxu0 %v875
      %1033 = vmatpush.msra.mxu0 %v874
      %1034 = vmatpush.msra.mxu0 %v873
      %1035 = vmatpush.msra.mxu0 %v872
      %1036 = vmatpush.msra.mxu0 %v871
      %1037 = vmatpush.msra.mxu0 %v870
      %1038 = vmatpush.msra.mxu0 %v869
      %1039 = vmatpush.msra.mxu0 %v868
      %1040 = vmatpush.msra.mxu0 %v867
      %1041 = vmatpush.msra.mxu0 %v866
      %1042 = vmatpush.msra.mxu0 %v865
      %1043 = vmatmul.f32.gmra.mxu0 %v807
      %v1044 = vpop.f32.mrf.mxu0
      %v1045 = vadd.f32 %v1022, %v1044
      %1046 = vmatmul.f32.gmra.mxu0 %v806
      %v1047 = vpop.f32.mrf.mxu0
      %v1048 = vadd.f32 %v1025, %v1047
      %1049 = vdwg.mxu0
      %1050 = vmatpush.msra.mxu0 %v896
      %1051 = vmatpush.msra.mxu0 %v895
      %1052 = vmatpush.msra.mxu0 %v894
      %1053 = vmatpush.msra.mxu0 %v893
      %1054 = vmatpush.msra.mxu0 %v892
      %1055 = vmatpush.msra.mxu0 %v891
      %1056 = vmatpush.msra.mxu0 %v890
      %1057 = vmatpush.msra.mxu0 %v889
      %1058 = vmatpush.msra.mxu0 %v888
      %1059 = vmatpush.msra.mxu0 %v887
      %1060 = vmatpush.msra.mxu0 %v886
      %1061 = vmatpush.msra.mxu0 %v885
      %1062 = vmatpush.msra.mxu0 %v884
      %1063 = vmatpush.msra.mxu0 %v883
      %1064 = vmatpush.msra.mxu0 %v882
      %1065 = vmatpush.msra.mxu0 %v881
      %1066 = vmatmul.f32.gmra.mxu0 %v812
      %v1067 = vpop.f32.mrf.mxu0
      %v1068 = vadd.f32 %v1045, %v1067
      %1069 = vmatmul.f32.gmra.mxu0 %v811
      %v1070 = vpop.f32.mrf.mxu0
      %v1071 = vadd.f32 %v1048, %v1070
      %1072 = vdwg.mxu0
      %1073 = vmatpush.msra.mxu0 %v912
      %1074 = vmatpush.msra.mxu0 %v911
      %1075 = vmatpush.msra.mxu0 %v910
      %1076 = vmatpush.msra.mxu0 %v909
      %1077 = vmatpush.msra.mxu0 %v908
      %1078 = vmatpush.msra.mxu0 %v907
      %1079 = vmatpush.msra.mxu0 %v906
      %1080 = vmatpush.msra.mxu0 %v905
      %1081 = vmatpush.msra.mxu0 %v904
      %1082 = vmatpush.msra.mxu0 %v903
      %1083 = vmatpush.msra.mxu0 %v902
      %1084 = vmatpush.msra.mxu0 %v901
      %1085 = vmatpush.msra.mxu0 %v900
      %1086 = vmatpush.msra.mxu0 %v899
      %1087 = vmatpush.msra.mxu0 %v898
      %1088 = vmatpush.msra.mxu0 %v897
      %1089 = vmatmul.f32.gmra.mxu0 %v817
      %v1090 = vpop.f32.mrf.mxu0
      %v1091 = vadd.f32 %v1068, %v1090
      %1092 = vmatmul.f32.gmra.mxu0 %v816
      %v1093 = vpop.f32.mrf.mxu0
      %v1094 = vadd.f32 %v1071, %v1093
      %1095 = vdwg.mxu0
      %1096 = vmatpush.msra.mxu0 %v928
      %1097 = vmatpush.msra.mxu0 %v927
      %1098 = vmatpush.msra.mxu0 %v926
      %1099 = vmatpush.msra.mxu0 %v925
      %1100 = vmatpush.msra.mxu0 %v924
      %1101 = vmatpush.msra.mxu0 %v923
      %1102 = vmatpush.msra.mxu0 %v922
      %1103 = vmatpush.msra.mxu0 %v921
      %1104 = vmatpush.msra.mxu0 %v920
      %1105 = vmatpush.msra.mxu0 %v919
      %1106 = vmatpush.msra.mxu0 %v918
      %1107 = vmatpush.msra.mxu0 %v917
      %1108 = vmatpush.msra.mxu0 %v916
      %1109 = vmatpush.msra.mxu0 %v915
      %1110 = vmatpush.msra.mxu0 %v914
      %1111 = vmatpush.msra.mxu0 %v913
      %1112 = vmatmul.f32.gmra.mxu0 %v822
      %v1113 = vpop.f32.mrf.mxu0
      %v1114 = vadd.f32 %v1091, %v1113
      %1115 = vmatmul.f32.gmra.mxu0 %v821
      %v1116 = vpop.f32.mrf.mxu0
      %v1117 = vadd.f32 %v1094, %v1116
      %1118 = vdwg.mxu0
      %1119 = vmatpush.msra.mxu0 %v944
      %1120 = vmatpush.msra.mxu0 %v943
      %1121 = vmatpush.msra.mxu0 %v942
      %1122 = vmatpush.msra.mxu0 %v941
      %1123 = vmatpush.msra.mxu0 %v940
      %1124 = vmatpush.msra.mxu0 %v939
      %1125 = vmatpush.msra.mxu0 %v938
      %1126 = vmatpush.msra.mxu0 %v937
      %1127 = vmatpush.msra.mxu0 %v936
      %1128 = vmatpush.msra.mxu0 %v935
      %1129 = vmatpush.msra.mxu0 %v934
      %1130 = vmatpush.msra.mxu0 %v933
      %1131 = vmatpush.msra.mxu0 %v932
      %1132 = vmatpush.msra.mxu0 %v931
      %1133 = vmatpush.msra.mxu0 %v930
      %1134 = vmatpush.msra.mxu0 %v929
      %1135 = vmatmul.f32.gmra.mxu0 %v827
      %v1136 = vpop.f32.mrf.mxu0
      %v1137 = vadd.f32 %v1114, %v1136
      %1138 = vmatmul.f32.gmra.mxu0 %v826
      %v1139 = vpop.f32.mrf.mxu0
      %v1140 = vadd.f32 %v1117, %v1139
      %1141 = vdwg.mxu0
      %1142 = vmatpush.msra.mxu0 %v960
      %1143 = vmatpush.msra.mxu0 %v959
      %1144 = vmatpush.msra.mxu0 %v958
      %1145 = vmatpush.msra.mxu0 %v957
      %1146 = vmatpush.msra.mxu0 %v956
      %1147 = vmatpush.msra.mxu0 %v955
      %1148 = vmatpush.msra.mxu0 %v954
      %1149 = vmatpush.msra.mxu0 %v953
      %1150 = vmatpush.msra.mxu0 %v952
      %1151 = vmatpush.msra.mxu0 %v951
      %1152 = vmatpush.msra.mxu0 %v950
      %1153 = vmatpush.msra.mxu0 %v949
      %1154 = vmatpush.msra.mxu0 %v948
      %1155 = vmatpush.msra.mxu0 %v947
      %1156 = vmatpush.msra.mxu0 %v946
      %1157 = vmatpush.msra.mxu0 %v945
      %1158 = vmatmul.f32.gmra.mxu0 %v832
      %v1159 = vpop.f32.mrf.mxu0
      %v1160 = vadd.f32 %v1137, %v1159
      %1161 = vmatmul.f32.gmra.mxu0 %v831
      %v1162 = vpop.f32.mrf.mxu0
      %v1163 = vadd.f32 %v1140, %v1162
      %1164 = vdwg.mxu0
      %1165 = vmatpush.msra.mxu0 %v976
      %1166 = vmatpush.msra.mxu0 %v975
      %1167 = vmatpush.msra.mxu0 %v974
      %1168 = vmatpush.msra.mxu0 %v973
      %1169 = vmatpush.msra.mxu0 %v972
      %1170 = vmatpush.msra.mxu0 %v971
      %1171 = vmatpush.msra.mxu0 %v970
      %1172 = vmatpush.msra.mxu0 %v969
      %1173 = vmatpush.msra.mxu0 %v968
      %1174 = vmatpush.msra.mxu0 %v967
      %1175 = vmatpush.msra.mxu0 %v966
      %1176 = vmatpush.msra.mxu0 %v965
      %1177 = vmatpush.msra.mxu0 %v964
      %1178 = vmatpush.msra.mxu0 %v963
      %1179 = vmatpush.msra.mxu0 %v962
      %1180 = vmatpush.msra.mxu0 %v961
      %1181 = vmatmul.f32.gmra.mxu0 %v796
      %v1182 = vpop.f32.mrf.mxu0
      %v1183 = vadd.f32 %v1160, %v1182
      %1184 = vmatmul.f32.gmra.mxu0 %v797
      %v1185 = vpop.f32.mrf.mxu0
      %v1186 = vadd.f32 %v1163, %v1185
      %1187 = vdwg.mxu0
      %v1188 = vadd.f32 %v1183, %v327
      %v1189 = vadd.f32 %v1186, %v328
      %v1190 = vmax.f32 %v1188, 0.0
      %v1191 = vmax.f32 %v1189, 0.0
      %1192 = vst [vmem:[%s323] sm:$0xff] %v1190
      %1193 = vst [vmem:[%s323 + $0x8] sm:$0xff] %v1191
      %s1194 = smul.u32 2, %s22
      %p1195 = scmp.lt.s32.totalorder %s21, 1
      %s1196 = scalar_select %p1195, %s21, 1
      %p1197 = scmp.lt.s32.totalorder %s1194, 1
      %s1198 = scalar_select %p1197, %s1194, 1
      %s1199 = smul.addr %s1196, 2
      %s1200 = sadd.s32 %s1198, %s1199
      %s1201 = smul.addr %s1200, 8
      %s1202 = scalar_lea.vmem %s6, %s1201
      // Predicated region
      $region45: #{basic_block_forward.1} parent=43 // pred_check
        %p1203 = pneg %p189
      $region46: #{basic_block_forward.1} parent=43 // pred_check_branch
        %1205 = sbr.rel (%p1203) target = $region48
      $region47: #{basic_block_forward.1} parent=43 // pred_region
        %s1206 = smul.u32 2, %s22
      $region48: #{basic_block_forward.1} parent=43 // pred_fallthru
        _
    $region44: #{basic_block_forward.1} parent=5 // pred_fallthru
      _
    %p1207 = scmp.le.s32.totalorder 2, %s12
    // Predicated region
    $region49: #{basic_block_forward.1} parent=5 // pred_check
      %p1208 = pneg %p1207
    $region50: #{basic_block_forward.1} parent=5 // pred_check_branch
      %1210 = sbr.rel (%p1208) target = $region52
    $region51: #{basic_block_forward.1} parent=5 // pred_region
      %s1211 = ssub.s32 %s12, 2
      // Predicated region
      $region53: #{basic_block_forward.1} parent=51 // pred_check
        %p1212 = pneg %p195
      $region54: #{basic_block_forward.1} parent=51 // pred_check_branch
        %1214 = sbr.rel (%p1212) target = $region56
      $region55: #{basic_block_forward.1} parent=51 // pred_region
        %s1215 = smul.u32 2, %s24
        %p1216 = scmp.lt.s32.totalorder %s23, 1
        %s1217 = scalar_select %p1216, %s23, 1
        %p1218 = scmp.lt.s32.totalorder %s1215, 1
        %s1219 = scalar_select %p1218, %s1215, 1
        %s1220 = smul.addr %s1217, 2
        %s1221 = sadd.s32 %s1219, %s1220
        %s1222 = smul.addr %s1221, 8
        %s1223 = scalar_lea.vmem %s6, %s1222
      $region56: #{basic_block_forward.1} parent=51 // pred_fallthru
        _
    $region52: #{basic_block_forward.1} parent=5 // pred_fallthru
      _
  $region6: #{basic_block_forward.1} parent=0 // loop_footer
    %s16 = sadd.s32 1, %s12
  $region7: #{basic_block_forward.1} parent=0 // loop_footer_branch
    %11 = sbr.rel target = $region3
  $region8: #{basic_block_forward.1} parent=0 // loop_exit
    _

</llo_original>
